<compile_context>
chip_gen: v5e
topology: v5e:2x2
jax: 0.10.0
libtpu: 0.0.40
codegen_flags: <defaults>
</compile_context>

<pallas_src>
import functools
import math

import jax
import jax.numpy as jnp
from jax.experimental import pallas as pl
from jax.experimental.pallas import tpu as pltpu

# ----------------------------- hyper-parameters ------------------------------
D_MODEL = 32
NUM_HEADS = 4
HEAD_DIM = D_MODEL // NUM_HEADS
D_FF = 64
NUM_LAYERS = 2
VOCAB_SIZE = 128          # keeps the logits store lane-dense (multiple of 128)
PAD_IDX = 1
MAX_LEN = 64
BATCH = 2
SEQ = 8

# ----------------------------- slab layout (rows) ----------------------------
_W_ROWS_PER_LAYER = 3 * D_MODEL + D_FF                  # wqkv + wo + w1 + w2
_W_ROWS_TOTAL = NUM_LAYERS * _W_ROWS_PER_LAYER + D_MODEL  # + wout
_P_ROWS_PER_LAYER = 8                                   # ln1 g/b, bqkv, bo, ln2 g/b, b1, b2
_P_LAYER0 = VOCAB_SIZE + MAX_LEN                        # emb rows + PE rows first
_P_FINAL = _P_LAYER0 + NUM_LAYERS * _P_ROWS_PER_LAYER   # lnf g/b, bout
_P_ROWS_TOTAL = _P_FINAL + 8                            # pad to 8-row alignment


# ------------------------------ fused Pallas kernel --------------------------
def _fused_forward_kernel(tok_ref, keyvalid_ref, wslab_ref, pslab_ref, o_ref, *,
                          batch, seq, d_model, num_heads, head_dim, d_ff,
                          num_layers, vocab_size, max_len, emb_scale):
  f32 = jnp.float32
  bf16 = jnp.bfloat16
  n = batch * seq

  def layer_norm(v, g, b):
    mean = jnp.mean(v, axis=-1, keepdims=True)
    cent = v - mean
    var = jnp.mean(cent * cent, axis=-1, keepdims=True)   # biased var (torch LN)
    return cent * jax.lax.rsqrt(var + 1e-5) * g + b

  # ---- embedding: exact gather via one-hot matmul, *sqrt(d_model), + PE ----
  tok = tok_ref[...]                                               # (n, 1) int32
  vocab_iota = jax.lax.broadcasted_iota(jnp.int32, (n, vocab_size), 1)
  onehot = (tok == vocab_iota).astype(f32)                         # (n, V)
  emb = pslab_ref[0:vocab_size, 0:d_model]                         # (V, D) f32
  x = jnp.dot(onehot, emb, preferred_element_type=f32) * emb_scale
  pe = pslab_ref[vocab_size:vocab_size + seq, 0:d_model]           # (S, D)
  x = x + jnp.concatenate([pe] * batch, axis=0)                    # (n, D)

  # ---- additive attention bias on the merged (n x n) token axis ----
  # block-causal within each batch element + key padding; 0 keep / -1e9 drop.
  r = jax.lax.broadcasted_iota(jnp.int32, (n, n), 0)
  c = jax.lax.broadcasted_iota(jnp.int32, (n, n), 1)
  blockcausal = jnp.zeros((n, n), f32)
  for b in range(batch):
    lo, hi = b * seq, (b + 1) * seq
    blk = (r >= lo) & (r < hi) & (c >= lo) & (c < hi) & (r >= c)
    blockcausal = blockcausal + blk.astype(f32)
  maskf = blockcausal * keyvalid_ref[...]                          # (n, n)
  bias_nn = (maskf - 1.0) * 1e9
  bias_bd = jnp.concatenate([bias_nn] * num_heads, axis=0)         # (H*n, n)

  # ---- head-selection masks (hoisted out of the layer loop) ----
  rH = jax.lax.broadcasted_iota(jnp.int32, (num_heads * n, d_model), 0)
  cH = jax.lax.broadcasted_iota(jnp.int32, (num_heads * n, d_model), 1)
  headmask_q = jnp.zeros((num_heads * n, d_model), f32)
  for h in range(num_heads):
    sel = ((rH >= h * n) & (rH < (h + 1) * n) &
           (cH >= h * head_dim) & (cH < (h + 1) * head_dim))
    headmask_q = headmask_q + sel.astype(f32)
  c1 = jax.lax.broadcasted_iota(jnp.int32, (1, d_model), 1)
  colmask = [((c1 >= h * head_dim) & (c1 < (h + 1) * head_dim)).astype(f32)
             for h in range(num_heads)]

  # ---- decoder layers (static unroll) ----
  for li in range(num_layers):
    wb = li * (3 * d_model + d_ff)
    pb = vocab_size + max_len + li * 8
    lp = pslab_ref[pb:pb + 8, :]                                   # (8, 128) f32
    ln1_g, ln1_b = lp[0:1, 0:d_model], lp[1:2, 0:d_model]
    bqkv = lp[2:3, :]                                              # (1, 128)
    bo = lp[3:4, 0:d_model]
    ln2_g, ln2_b = lp[4:5, 0:d_model], lp[5:6, 0:d_model]
    b1, b2 = lp[6:7, 0:d_ff], lp[7:8, 0:d_model]

    # -------- pre-LN masked multi-head self-attention --------
    hln = layer_norm(x, ln1_g, ln1_b)
    wqkv = wslab_ref[wb:wb + d_model, :]                           # (D, 128) bf16
    qkv = jnp.dot(hln.astype(bf16), wqkv, preferred_element_type=f32) + bqkv
    q = qkv[:, 0:d_model]
    k = qkv[:, d_model:2 * d_model]
    v = qkv[:, 2 * d_model:3 * d_model]

    # all heads at once: replicate Q along sublanes, mask each replica to its
    # head's feature block -> scores and context are ONE matmul each.
    qbd = jnp.concatenate([q] * num_heads, axis=0) * headmask_q    # (H*n, D)
    s = jnp.dot(qbd, k.T, preferred_element_type=f32) + bias_bd    # (H*n, n)
    s = s - jnp.max(s, axis=-1, keepdims=True)
    p = jnp.exp(s)
    p = p * pl.reciprocal(jnp.sum(p, axis=-1, keepdims=True), approx=True)
    ctxf = jnp.dot(p, v, preferred_element_type=f32)               # (H*n, D)
    ctx = jnp.zeros((n, d_model), f32)
    for h in range(num_heads):
      ctx = ctx + ctxf[h * n:(h + 1) * n, :] * colmask[h]          # (n, D)

    wo = wslab_ref[wb + d_model:wb + 2 * d_model, 0:d_model]       # (D, D) bf16
    x = x + jnp.dot(ctx.astype(bf16), wo, preferred_element_type=f32) + bo

    # -------- pre-LN position-wise feed-forward (ReLU) --------
    hln = layer_norm(x, ln2_g, ln2_b)
    w1 = wslab_ref[wb + 2 * d_model:wb + 3 * d_model, 0:d_ff]      # (D, F) bf16
    w2 = wslab_ref[wb + 3 * d_model:wb + 3 * d_model + d_ff, 0:d_model]
    ff = jnp.dot(hln.astype(bf16), w1, preferred_element_type=f32) + b1
    ff = jnp.maximum(ff, 0.0)
    x = x + jnp.dot(ff.astype(bf16), w2, preferred_element_type=f32) + b2

  # ---- final LayerNorm + output projection (lane-dense 128-wide store) ----
  fb = vocab_size + max_len + num_layers * 8
  fp = pslab_ref[fb:fb + 8, :]
  lnf_g, lnf_b = fp[0:1, 0:d_model], fp[1:2, 0:d_model]
  bout = fp[2:3, :]                                                # (1, V)
  xf = layer_norm(x, lnf_g, lnf_b)
  wout = wslab_ref[num_layers * (3 * d_model + d_ff):
                   num_layers * (3 * d_model + d_ff) + d_model, :] # (D, V) bf16
  o_ref[...] = jnp.dot(xf.astype(bf16), wout, preferred_element_type=f32) + bout


# ------------------------------ parameter setup ------------------------------
def init_params(key):
  def nrm(k, shape, scale=0.02):
    return (scale * jax.random.normal(k, shape)).astype(jnp.float32)

  keys = jax.random.split(key, 2 + NUM_LAYERS)

  emb = nrm(keys[0], (VOCAB_SIZE, D_MODEL)).at[PAD_IDX].set(0.0)   # zero PAD row
  pos = jnp.arange(MAX_LEN, dtype=jnp.float32)[:, None]
  div = jnp.exp(jnp.arange(0, D_MODEL, 2, dtype=jnp.float32)
                * (-math.log(10000.0) / D_MODEL))
  pe = jnp.zeros((MAX_LEN, D_MODEL), jnp.float32)
  pe = pe.at[:, 0::2].set(jnp.sin(pos * div))
  pe = pe.at[:, 1::2].set(jnp.cos(pos * div))

  attn_scale = 1.0 / math.sqrt(HEAD_DIM)     # folded into wq (zero-cost at init)

  wslab = jnp.zeros((_W_ROWS_TOTAL, 128), jnp.float32)
  pslab = jnp.zeros((_P_ROWS_TOTAL, 128), jnp.float32)

  pslab = pslab.at[0:VOCAB_SIZE, 0:D_MODEL].set(emb)
  pslab = pslab.at[VOCAB_SIZE:VOCAB_SIZE + MAX_LEN, 0:D_MODEL].set(pe)

  for li in range(NUM_LAYERS):
    lk = jax.random.split(keys[2 + li], 6)
    wq = nrm(lk[0], (D_MODEL, D_MODEL)) * attn_scale
    wk = nrm(lk[1], (D_MODEL, D_MODEL))
    wv = nrm(lk[2], (D_MODEL, D_MODEL))
    wo = nrm(lk[3], (D_MODEL, D_MODEL))
    w1 = nrm(lk[4], (D_MODEL, D_FF))
    w2 = nrm(lk[5], (D_FF, D_MODEL))
    wb = li * _W_ROWS_PER_LAYER
    wslab = wslab.at[wb:wb + D_MODEL, 0:D_MODEL].set(wq)
    wslab = wslab.at[wb:wb + D_MODEL, D_MODEL:2 * D_MODEL].set(wk)
    wslab = wslab.at[wb:wb + D_MODEL, 2 * D_MODEL:3 * D_MODEL].set(wv)
    wslab = wslab.at[wb + D_MODEL:wb + 2 * D_MODEL, 0:D_MODEL].set(wo)
    wslab = wslab.at[wb + 2 * D_MODEL:wb + 3 * D_MODEL, 0:D_FF].set(w1)
    wslab = wslab.at[wb + 3 * D_MODEL:wb + 3 * D_MODEL + D_FF, 0:D_MODEL].set(w2)

    pb = _P_LAYER0 + li * _P_ROWS_PER_LAYER
    pslab = pslab.at[pb + 0, 0:D_MODEL].set(1.0)   # ln1 gamma
    pslab = pslab.at[pb + 4, 0:D_MODEL].set(1.0)   # ln2 gamma
    # LN betas and all Linear biases stay zero-initialized.

  wslab = wslab.at[NUM_LAYERS * _W_ROWS_PER_LAYER:
                   NUM_LAYERS * _W_ROWS_PER_LAYER + D_MODEL,
                   0:VOCAB_SIZE].set(nrm(keys[1], (D_MODEL, VOCAB_SIZE)))
  pslab = pslab.at[_P_FINAL + 0, 0:D_MODEL].set(1.0)   # final LN gamma

  return {"wslab": wslab.astype(jnp.bfloat16),   # MXU-native bf16 weight slab
          "pslab": pslab}                         # f32 emb/PE/LN/bias slab


# -------------------------------- forward pass -------------------------------
def text_generator_forward(params, tokens):
  B, S = tokens.shape
  n = B * S
  # Only glue left outside the kernel: token reshape + (1, n) key-validity row.
  tok_col = tokens.reshape(n, 1).astype(jnp.int32)
  keyvalid = (tokens.reshape(1, n) != PAD_IDX).astype(jnp.float32)

  kern = functools.partial(
      _fused_forward_kernel, batch=B, seq=S, d_model=D_MODEL,
      num_heads=NUM_HEADS, head_dim=HEAD_DIM, d_ff=D_FF,
      num_layers=NUM_LAYERS, vocab_size=VOCAB_SIZE, max_len=MAX_LEN,
      emb_scale=math.sqrt(D_MODEL))

  vmem = functools.partial(pl.BlockSpec, memory_space=pltpu.MemorySpace.VMEM)
  # Grid-less pallas_call: whole arrays resident in VMEM, no pipelining
  # machinery, 4 input DMAs, one lane-dense (B*S, 128) output store.
  logits = pl.pallas_call(
      kern,
      out_shape=jax.ShapeDtypeStruct((n, VOCAB_SIZE), jnp.float32),
      in_specs=[vmem(), vmem(), vmem(), vmem()],
      out_specs=vmem(),
  )(tok_col, keyvalid, params["wslab"], params["pslab"])
  return logits.reshape(B, S, VOCAB_SIZE)


# ----------------------------------- main -------------------------------------
if __name__ == "__main__":
  key = jax.random.PRNGKey(0)
  pkey, tkey = jax.random.split(key)

  params = init_params(pkey)

  tokens = jax.random.randint(tkey, (BATCH, SEQ), 0, VOCAB_SIZE, dtype=jnp.int32)
  # make the tail of the second sequence padding to exercise the padding mask
  tokens = tokens.at[1, -3:].set(PAD_IDX)

  fwd = jax.jit(text_generator_forward)
  logits = jax.block_until_ready(fwd(params, tokens))

  assert logits.shape == (BATCH, SEQ, VOCAB_SIZE)
  assert bool(jnp.all(jnp.isfinite(logits)))
  print("KERNEL_OK")
</pallas_src>

<mosaic_0001>
module attributes {stable_mosaic.version = 11 : i64} {
  func.func @_fused_forward_kernel(%arg0: memref<16x1xi32, #tpu.memory_space<vmem>>, %arg1: memref<1x16xf32, #tpu.memory_space<vmem>>, %arg2: memref<352x128xbf16, #tpu.memory_space<vmem>>, %arg3: memref<216x128xf32, #tpu.memory_space<vmem>>, %arg4: memref<16x128xf32, #tpu.memory_space<vmem>>) attributes {dimension_semantics = [], scalar_prefetch = 0 : i64, scratch_operands = 0 : i64, tpu.core_type = #tpu.core_type<tc>} {
    %c0 = arith.constant 0 : index
    %c0_0 = arith.constant 0 : index
    %0 = vector.load %arg0[%c0, %c0_0] : memref<16x1xi32, #tpu.memory_space<vmem>>, vector<16x1xi32>
    %1 = tpu.iota {dimensions = array<i32: 1>} : vector<16x128xi32>
    %2 = vector.broadcast %0 : vector<16x1xi32> to vector<16x128xi32>
    %3 = arith.cmpi eq, %2, %1 : vector<16x128xi32>
    %4 = arith.extui %3 : vector<16x128xi1> to vector<16x128xi32>
    %5 = arith.sitofp %4 : vector<16x128xi32> to vector<16x128xf32>
    %c0_1 = arith.constant 0 : index
    %c0_2 = arith.constant 0 : index
    %6 = vector.load %arg3[%c0_1, %c0_2] : memref<216x128xf32, #tpu.memory_space<vmem>>, vector<128x32xf32>
    %cst = arith.constant dense<0.000000e+00> : vector<16x32xf32>
    %7 = tpu.matmul %5, %6, %cst {dimension_numbers = #tpu.dot_dimension_numbers<[1], [0], [0], [1], [0, 0, 1, 1], [], []>} : vector<16x128xf32>, vector<128x32xf32>, vector<16x32xf32> -> vector<16x32xf32>
    %cst_3 = arith.constant 5.65685415 : f32
    %8 = vector.broadcast %cst_3 : f32 to vector<16x32xf32>
    %9 = arith.mulf %7, %8 : vector<16x32xf32>
    %c128 = arith.constant 128 : index
    %c0_4 = arith.constant 0 : index
    %10 = vector.load %arg3[%c128, %c0_4] : memref<216x128xf32, #tpu.memory_space<vmem>>, vector<8x32xf32>
    %11 = tpu.concatenate %10, %10 in 0 : vector<8x32xf32>, vector<8x32xf32> -> vector<16x32xf32>
    %12 = arith.addf %9, %11 : vector<16x32xf32>
    %13 = tpu.iota {dimensions = array<i32: 0>} : vector<16x16xi32>
    %14 = tpu.iota {dimensions = array<i32: 1>} : vector<16x16xi32>
    %cst_5 = arith.constant 0.000000e+00 : f32
    %15 = vector.broadcast %cst_5 : f32 to vector<16x16xf32>
    %c0_i32 = arith.constant 0 : i32
    %16 = vector.broadcast %c0_i32 : i32 to vector<16x16xi32>
    %17 = arith.cmpi sge, %13, %16 : vector<16x16xi32>
    %c8_i32 = arith.constant 8 : i32
    %18 = vector.broadcast %c8_i32 : i32 to vector<16x16xi32>
    %19 = arith.cmpi slt, %13, %18 : vector<16x16xi32>
    %20 = arith.andi %17, %19 : vector<16x16xi1>
    %c0_i32_6 = arith.constant 0 : i32
    %21 = vector.broadcast %c0_i32_6 : i32 to vector<16x16xi32>
    %22 = arith.cmpi sge, %14, %21 : vector<16x16xi32>
    %23 = arith.andi %20, %22 : vector<16x16xi1>
    %c8_i32_7 = arith.constant 8 : i32
    %24 = vector.broadcast %c8_i32_7 : i32 to vector<16x16xi32>
    %25 = arith.cmpi slt, %14, %24 : vector<16x16xi32>
    %26 = arith.andi %23, %25 : vector<16x16xi1>
    %27 = arith.cmpi sge, %13, %14 : vector<16x16xi32>
    %28 = arith.andi %26, %27 : vector<16x16xi1>
    %29 = arith.extui %28 : vector<16x16xi1> to vector<16x16xi32>
    %30 = arith.sitofp %29 : vector<16x16xi32> to vector<16x16xf32>
    %31 = arith.addf %15, %30 : vector<16x16xf32>
    %c8_i32_8 = arith.constant 8 : i32
    %32 = vector.broadcast %c8_i32_8 : i32 to vector<16x16xi32>
    %33 = arith.cmpi sge, %13, %32 : vector<16x16xi32>
    %c16_i32 = arith.constant 16 : i32
    %34 = vector.broadcast %c16_i32 : i32 to vector<16x16xi32>
    %35 = arith.cmpi slt, %13, %34 : vector<16x16xi32>
    %36 = arith.andi %33, %35 : vector<16x16xi1>
    %c8_i32_9 = arith.constant 8 : i32
    %37 = vector.broadcast %c8_i32_9 : i32 to vector<16x16xi32>
    %38 = arith.cmpi sge, %14, %37 : vector<16x16xi32>
    %39 = arith.andi %36, %38 : vector<16x16xi1>
    %c16_i32_10 = arith.constant 16 : i32
    %40 = vector.broadcast %c16_i32_10 : i32 to vector<16x16xi32>
    %41 = arith.cmpi slt, %14, %40 : vector<16x16xi32>
    %42 = arith.andi %39, %41 : vector<16x16xi1>
    %43 = arith.cmpi sge, %13, %14 : vector<16x16xi32>
    %44 = arith.andi %42, %43 : vector<16x16xi1>
    %45 = arith.extui %44 : vector<16x16xi1> to vector<16x16xi32>
    %46 = arith.sitofp %45 : vector<16x16xi32> to vector<16x16xf32>
    %47 = arith.addf %31, %46 : vector<16x16xf32>
    %c0_11 = arith.constant 0 : index
    %c0_12 = arith.constant 0 : index
    %48 = vector.load %arg1[%c0_11, %c0_12] : memref<1x16xf32, #tpu.memory_space<vmem>>, vector<1x16xf32>
    %49 = vector.broadcast %48 : vector<1x16xf32> to vector<16x16xf32>
    %50 = arith.mulf %47, %49 : vector<16x16xf32>
    %cst_13 = arith.constant 1.000000e+00 : f32
    %51 = vector.broadcast %cst_13 : f32 to vector<16x16xf32>
    %52 = arith.subf %50, %51 : vector<16x16xf32>
    %cst_14 = arith.constant 1.000000e+09 : f32
    %53 = vector.broadcast %cst_14 : f32 to vector<16x16xf32>
    %54 = arith.mulf %52, %53 : vector<16x16xf32>
    %55 = tpu.concatenate %54, %54, %54, %54 in 0 : vector<16x16xf32>, vector<16x16xf32>, vector<16x16xf32>, vector<16x16xf32> -> vector<64x16xf32>
    %56 = tpu.iota {dimensions = array<i32: 0>} : vector<64x32xi32>
    %57 = tpu.iota {dimensions = array<i32: 1>} : vector<64x32xi32>
    %cst_15 = arith.constant 0.000000e+00 : f32
    %58 = vector.broadcast %cst_15 : f32 to vector<64x32xf32>
    %c0_i32_16 = arith.constant 0 : i32
    %59 = vector.broadcast %c0_i32_16 : i32 to vector<64x32xi32>
    %60 = arith.cmpi sge, %56, %59 : vector<64x32xi32>
    %c16_i32_17 = arith.constant 16 : i32
    %61 = vector.broadcast %c16_i32_17 : i32 to vector<64x32xi32>
    %62 = arith.cmpi slt, %56, %61 : vector<64x32xi32>
    %63 = arith.andi %60, %62 : vector<64x32xi1>
    %c0_i32_18 = arith.constant 0 : i32
    %64 = vector.broadcast %c0_i32_18 : i32 to vector<64x32xi32>
    %65 = arith.cmpi sge, %57, %64 : vector<64x32xi32>
    %66 = arith.andi %63, %65 : vector<64x32xi1>
    %c8_i32_19 = arith.constant 8 : i32
    %67 = vector.broadcast %c8_i32_19 : i32 to vector<64x32xi32>
    %68 = arith.cmpi slt, %57, %67 : vector<64x32xi32>
    %69 = arith.andi %66, %68 : vector<64x32xi1>
    %70 = arith.extui %69 : vector<64x32xi1> to vector<64x32xi32>
    %71 = arith.sitofp %70 : vector<64x32xi32> to vector<64x32xf32>
    %72 = arith.addf %58, %71 : vector<64x32xf32>
    %c16_i32_20 = arith.constant 16 : i32
    %73 = vector.broadcast %c16_i32_20 : i32 to vector<64x32xi32>
    %74 = arith.cmpi sge, %56, %73 : vector<64x32xi32>
    %c32_i32 = arith.constant 32 : i32
    %75 = vector.broadcast %c32_i32 : i32 to vector<64x32xi32>
    %76 = arith.cmpi slt, %56, %75 : vector<64x32xi32>
    %77 = arith.andi %74, %76 : vector<64x32xi1>
    %c8_i32_21 = arith.constant 8 : i32
    %78 = vector.broadcast %c8_i32_21 : i32 to vector<64x32xi32>
    %79 = arith.cmpi sge, %57, %78 : vector<64x32xi32>
    %80 = arith.andi %77, %79 : vector<64x32xi1>
    %c16_i32_22 = arith.constant 16 : i32
    %81 = vector.broadcast %c16_i32_22 : i32 to vector<64x32xi32>
    %82 = arith.cmpi slt, %57, %81 : vector<64x32xi32>
    %83 = arith.andi %80, %82 : vector<64x32xi1>
    %84 = arith.extui %83 : vector<64x32xi1> to vector<64x32xi32>
    %85 = arith.sitofp %84 : vector<64x32xi32> to vector<64x32xf32>
    %86 = arith.addf %72, %85 : vector<64x32xf32>
    %c32_i32_23 = arith.constant 32 : i32
    %87 = vector.broadcast %c32_i32_23 : i32 to vector<64x32xi32>
    %88 = arith.cmpi sge, %56, %87 : vector<64x32xi32>
    %c48_i32 = arith.constant 48 : i32
    %89 = vector.broadcast %c48_i32 : i32 to vector<64x32xi32>
    %90 = arith.cmpi slt, %56, %89 : vector<64x32xi32>
    %91 = arith.andi %88, %90 : vector<64x32xi1>
    %c16_i32_24 = arith.constant 16 : i32
    %92 = vector.broadcast %c16_i32_24 : i32 to vector<64x32xi32>
    %93 = arith.cmpi sge, %57, %92 : vector<64x32xi32>
    %94 = arith.andi %91, %93 : vector<64x32xi1>
    %c24_i32 = arith.constant 24 : i32
    %95 = vector.broadcast %c24_i32 : i32 to vector<64x32xi32>
    %96 = arith.cmpi slt, %57, %95 : vector<64x32xi32>
    %97 = arith.andi %94, %96 : vector<64x32xi1>
    %98 = arith.extui %97 : vector<64x32xi1> to vector<64x32xi32>
    %99 = arith.sitofp %98 : vector<64x32xi32> to vector<64x32xf32>
    %100 = arith.addf %86, %99 : vector<64x32xf32>
    %c48_i32_25 = arith.constant 48 : i32
    %101 = vector.broadcast %c48_i32_25 : i32 to vector<64x32xi32>
    %102 = arith.cmpi sge, %56, %101 : vector<64x32xi32>
    %c64_i32 = arith.constant 64 : i32
    %103 = vector.broadcast %c64_i32 : i32 to vector<64x32xi32>
    %104 = arith.cmpi slt, %56, %103 : vector<64x32xi32>
    %105 = arith.andi %102, %104 : vector<64x32xi1>
    %c24_i32_26 = arith.constant 24 : i32
    %106 = vector.broadcast %c24_i32_26 : i32 to vector<64x32xi32>
    %107 = arith.cmpi sge, %57, %106 : vector<64x32xi32>
    %108 = arith.andi %105, %107 : vector<64x32xi1>
    %c32_i32_27 = arith.constant 32 : i32
    %109 = vector.broadcast %c32_i32_27 : i32 to vector<64x32xi32>
    %110 = arith.cmpi slt, %57, %109 : vector<64x32xi32>
    %111 = arith.andi %108, %110 : vector<64x32xi1>
    %112 = arith.extui %111 : vector<64x32xi1> to vector<64x32xi32>
    %113 = arith.sitofp %112 : vector<64x32xi32> to vector<64x32xf32>
    %114 = arith.addf %100, %113 : vector<64x32xf32>
    %115 = tpu.iota {dimensions = array<i32: 1>} : vector<1x32xi32>
    %c0_i32_28 = arith.constant 0 : i32
    %116 = vector.broadcast %c0_i32_28 : i32 to vector<1x32xi32>
    %117 = arith.cmpi sge, %115, %116 : vector<1x32xi32>
    %c8_i32_29 = arith.constant 8 : i32
    %118 = vector.broadcast %c8_i32_29 : i32 to vector<1x32xi32>
    %119 = arith.cmpi slt, %115, %118 : vector<1x32xi32>
    %120 = arith.andi %117, %119 : vector<1x32xi1>
    %121 = arith.extui %120 : vector<1x32xi1> to vector<1x32xi32>
    %122 = arith.sitofp %121 : vector<1x32xi32> to vector<1x32xf32>
    %c8_i32_30 = arith.constant 8 : i32
    %123 = vector.broadcast %c8_i32_30 : i32 to vector<1x32xi32>
    %124 = arith.cmpi sge, %115, %123 : vector<1x32xi32>
    %c16_i32_31 = arith.constant 16 : i32
    %125 = vector.broadcast %c16_i32_31 : i32 to vector<1x32xi32>
    %126 = arith.cmpi slt, %115, %125 : vector<1x32xi32>
    %127 = arith.andi %124, %126 : vector<1x32xi1>
    %128 = arith.extui %127 : vector<1x32xi1> to vector<1x32xi32>
    %129 = arith.sitofp %128 : vector<1x32xi32> to vector<1x32xf32>
    %c16_i32_32 = arith.constant 16 : i32
    %130 = vector.broadcast %c16_i32_32 : i32 to vector<1x32xi32>
    %131 = arith.cmpi sge, %115, %130 : vector<1x32xi32>
    %c24_i32_33 = arith.constant 24 : i32
    %132 = vector.broadcast %c24_i32_33 : i32 to vector<1x32xi32>
    %133 = arith.cmpi slt, %115, %132 : vector<1x32xi32>
    %134 = arith.andi %131, %133 : vector<1x32xi1>
    %135 = arith.extui %134 : vector<1x32xi1> to vector<1x32xi32>
    %136 = arith.sitofp %135 : vector<1x32xi32> to vector<1x32xf32>
    %c24_i32_34 = arith.constant 24 : i32
    %137 = vector.broadcast %c24_i32_34 : i32 to vector<1x32xi32>
    %138 = arith.cmpi sge, %115, %137 : vector<1x32xi32>
    %c32_i32_35 = arith.constant 32 : i32
    %139 = vector.broadcast %c32_i32_35 : i32 to vector<1x32xi32>
    %140 = arith.cmpi slt, %115, %139 : vector<1x32xi32>
    %141 = arith.andi %138, %140 : vector<1x32xi1>
    %142 = arith.extui %141 : vector<1x32xi1> to vector<1x32xi32>
    %143 = arith.sitofp %142 : vector<1x32xi32> to vector<1x32xf32>
    %c192 = arith.constant 192 : index
    %c0_36 = arith.constant 0 : index
    %144 = vector.load %arg3[%c192, %c0_36] : memref<216x128xf32, #tpu.memory_space<vmem>>, vector<8x128xf32>
    %145 = vector.extract_strided_slice %144 {offsets = [0, 0], sizes = [1, 32], strides = [1, 1]} : vector<8x128xf32> to vector<1x32xf32>
    %146 = vector.extract_strided_slice %144 {offsets = [1, 0], sizes = [1, 32], strides = [1, 1]} : vector<8x128xf32> to vector<1x32xf32>
    %147 = vector.extract_strided_slice %144 {offsets = [2, 0], sizes = [1, 128], strides = [1, 1]} : vector<8x128xf32> to vector<1x128xf32>
    %148 = vector.extract_strided_slice %144 {offsets = [3, 0], sizes = [1, 32], strides = [1, 1]} : vector<8x128xf32> to vector<1x32xf32>
    %149 = vector.extract_strided_slice %144 {offsets = [4, 0], sizes = [1, 32], strides = [1, 1]} : vector<8x128xf32> to vector<1x32xf32>
    %150 = vector.extract_strided_slice %144 {offsets = [5, 0], sizes = [1, 32], strides = [1, 1]} : vector<8x128xf32> to vector<1x32xf32>
    %151 = vector.extract_strided_slice %144 {offsets = [6, 0], sizes = [1, 64], strides = [1, 1]} : vector<8x128xf32> to vector<1x64xf32>
    %152 = vector.extract_strided_slice %144 {offsets = [7, 0], sizes = [1, 32], strides = [1, 1]} : vector<8x128xf32> to vector<1x32xf32>
    %cst_37 = arith.constant dense<0.000000e+00> : vector<16xf32>
    %153 = vector.multi_reduction <add>, %12, %cst_37 [1] : vector<16x32xf32> to vector<16xf32>
    %154 = vector.shape_cast %153 : vector<16xf32> to vector<16x1xf32>
    %cst_38 = arith.constant 3.200000e+01 : f32
    %155 = vector.broadcast %cst_38 : f32 to vector<16x1xf32>
    %156 = arith.divf %154, %155 : vector<16x1xf32>
    %157 = vector.broadcast %156 : vector<16x1xf32> to vector<16x32xf32>
    %158 = arith.subf %12, %157 : vector<16x32xf32>
    %159 = arith.mulf %158, %158 : vector<16x32xf32>
    %cst_39 = arith.constant dense<0.000000e+00> : vector<16xf32>
    %160 = vector.multi_reduction <add>, %159, %cst_39 [1] : vector<16x32xf32> to vector<16xf32>
    %161 = vector.shape_cast %160 : vector<16xf32> to vector<16x1xf32>
    %cst_40 = arith.constant 3.200000e+01 : f32
    %162 = vector.broadcast %cst_40 : f32 to vector<16x1xf32>
    %163 = arith.divf %161, %162 : vector<16x1xf32>
    %cst_41 = arith.constant 9.99999974E-6 : f32
    %164 = vector.broadcast %cst_41 : f32 to vector<16x1xf32>
    %165 = arith.addf %163, %164 : vector<16x1xf32>
    %166 = math.rsqrt %165 : vector<16x1xf32>
    %167 = vector.broadcast %166 : vector<16x1xf32> to vector<16x32xf32>
    %168 = arith.mulf %158, %167 : vector<16x32xf32>
    %169 = vector.broadcast %145 : vector<1x32xf32> to vector<16x32xf32>
    %170 = arith.mulf %168, %169 : vector<16x32xf32>
    %171 = vector.broadcast %146 : vector<1x32xf32> to vector<16x32xf32>
    %172 = arith.addf %170, %171 : vector<16x32xf32>
    %c0_42 = arith.constant 0 : index
    %c0_43 = arith.constant 0 : index
    %173 = vector.load %arg2[%c0_42, %c0_43] : memref<352x128xbf16, #tpu.memory_space<vmem>>, vector<32x128xbf16>
    %174 = arith.truncf %172 : vector<16x32xf32> to vector<16x32xbf16>
    %cst_44 = arith.constant dense<0.000000e+00> : vector<16x128xf32>
    %175 = tpu.matmul %174, %173, %cst_44 {dimension_numbers = #tpu.dot_dimension_numbers<[1], [0], [0], [1], [0, 0, 1, 1], [], []>} : vector<16x32xbf16>, vector<32x128xbf16>, vector<16x128xf32> -> vector<16x128xf32>
    %176 = vector.broadcast %147 : vector<1x128xf32> to vector<16x128xf32>
    %177 = arith.addf %175, %176 : vector<16x128xf32>
    %178 = vector.extract_strided_slice %177 {offsets = [0, 0], sizes = [16, 32], strides = [1, 1]} : vector<16x128xf32> to vector<16x32xf32>
    %179 = vector.extract_strided_slice %177 {offsets = [0, 32], sizes = [16, 32], strides = [1, 1]} : vector<16x128xf32> to vector<16x32xf32>
    %180 = vector.extract_strided_slice %177 {offsets = [0, 64], sizes = [16, 32], strides = [1, 1]} : vector<16x128xf32> to vector<16x32xf32>
    %181 = tpu.concatenate %178, %178, %178, %178 in 0 : vector<16x32xf32>, vector<16x32xf32>, vector<16x32xf32>, vector<16x32xf32> -> vector<64x32xf32>
    %182 = arith.mulf %181, %114 : vector<64x32xf32>
    %183 = tpu.transpose %179, [1, 0] : vector<16x32xf32> -> vector<32x16xf32>
    %cst_45 = arith.constant dense<0.000000e+00> : vector<64x16xf32>
    %184 = tpu.matmul %182, %183, %cst_45 {dimension_numbers = #tpu.dot_dimension_numbers<[1], [0], [0], [1], [0, 0, 1, 1], [], []>} : vector<64x32xf32>, vector<32x16xf32>, vector<64x16xf32> -> vector<64x16xf32>
    %185 = arith.addf %184, %55 : vector<64x16xf32>
    %cst_46 = arith.constant dense<0xFF800000> : vector<64xf32>
    %186 = vector.multi_reduction <maximumf>, %185, %cst_46 [1] : vector<64x16xf32> to vector<64xf32>
    %187 = vector.shape_cast %186 : vector<64xf32> to vector<64x1xf32>
    %188 = vector.broadcast %187 : vector<64x1xf32> to vector<64x16xf32>
    %189 = arith.subf %185, %188 : vector<64x16xf32>
    %190 = math.exp %189 : vector<64x16xf32>
    %cst_47 = arith.constant dense<0.000000e+00> : vector<64xf32>
    %191 = vector.multi_reduction <add>, %190, %cst_47 [1] : vector<64x16xf32> to vector<64xf32>
    %192 = vector.shape_cast %191 : vector<64xf32> to vector<64x1xf32>
    %193 = tpu.reciprocal %192 {approx = true} : vector<64x1xf32> -> vector<64x1xf32>
    %194 = vector.broadcast %193 : vector<64x1xf32> to vector<64x16xf32>
    %195 = arith.mulf %190, %194 : vector<64x16xf32>
    %cst_48 = arith.constant dense<0.000000e+00> : vector<64x32xf32>
    %196 = tpu.matmul %195, %180, %cst_48 {dimension_numbers = #tpu.dot_dimension_numbers<[1], [0], [0], [1], [0, 0, 1, 1], [], []>} : vector<64x16xf32>, vector<16x32xf32>, vector<64x32xf32> -> vector<64x32xf32>
    %cst_49 = arith.constant 0.000000e+00 : f32
    %197 = vector.broadcast %cst_49 : f32 to vector<16x32xf32>
    %198 = vector.extract_strided_slice %196 {offsets = [0, 0], sizes = [16, 32], strides = [1, 1]} : vector<64x32xf32> to vector<16x32xf32>
    %199 = vector.broadcast %122 : vector<1x32xf32> to vector<16x32xf32>
    %200 = arith.mulf %198, %199 : vector<16x32xf32>
    %201 = arith.addf %197, %200 : vector<16x32xf32>
    %202 = vector.extract_strided_slice %196 {offsets = [16, 0], sizes = [16, 32], strides = [1, 1]} : vector<64x32xf32> to vector<16x32xf32>
    %203 = vector.broadcast %129 : vector<1x32xf32> to vector<16x32xf32>
    %204 = arith.mulf %202, %203 : vector<16x32xf32>
    %205 = arith.addf %201, %204 : vector<16x32xf32>
    %206 = vector.extract_strided_slice %196 {offsets = [32, 0], sizes = [16, 32], strides = [1, 1]} : vector<64x32xf32> to vector<16x32xf32>
    %207 = vector.broadcast %136 : vector<1x32xf32> to vector<16x32xf32>
    %208 = arith.mulf %206, %207 : vector<16x32xf32>
    %209 = arith.addf %205, %208 : vector<16x32xf32>
    %210 = vector.extract_strided_slice %196 {offsets = [48, 0], sizes = [16, 32], strides = [1, 1]} : vector<64x32xf32> to vector<16x32xf32>
    %211 = vector.broadcast %143 : vector<1x32xf32> to vector<16x32xf32>
    %212 = arith.mulf %210, %211 : vector<16x32xf32>
    %213 = arith.addf %209, %212 : vector<16x32xf32>
    %c32 = arith.constant 32 : index
    %c0_50 = arith.constant 0 : index
    %214 = vector.load %arg2[%c32, %c0_50] : memref<352x128xbf16, #tpu.memory_space<vmem>>, vector<32x32xbf16>
    %215 = arith.truncf %213 : vector<16x32xf32> to vector<16x32xbf16>
    %cst_51 = arith.constant dense<0.000000e+00> : vector<16x32xf32>
    %216 = tpu.matmul %215, %214, %cst_51 {dimension_numbers = #tpu.dot_dimension_numbers<[1], [0], [0], [1], [0, 0, 1, 1], [], []>} : vector<16x32xbf16>, vector<32x32xbf16>, vector<16x32xf32> -> vector<16x32xf32>
    %217 = arith.addf %12, %216 : vector<16x32xf32>
    %218 = vector.broadcast %148 : vector<1x32xf32> to vector<16x32xf32>
    %219 = arith.addf %217, %218 : vector<16x32xf32>
    %cst_52 = arith.constant dense<0.000000e+00> : vector<16xf32>
    %220 = vector.multi_reduction <add>, %219, %cst_52 [1] : vector<16x32xf32> to vector<16xf32>
    %221 = vector.shape_cast %220 : vector<16xf32> to vector<16x1xf32>
    %cst_53 = arith.constant 3.200000e+01 : f32
    %222 = vector.broadcast %cst_53 : f32 to vector<16x1xf32>
    %223 = arith.divf %221, %222 : vector<16x1xf32>
    %224 = vector.broadcast %223 : vector<16x1xf32> to vector<16x32xf32>
    %225 = arith.subf %219, %224 : vector<16x32xf32>
    %226 = arith.mulf %225, %225 : vector<16x32xf32>
    %cst_54 = arith.constant dense<0.000000e+00> : vector<16xf32>
    %227 = vector.multi_reduction <add>, %226, %cst_54 [1] : vector<16x32xf32> to vector<16xf32>
    %228 = vector.shape_cast %227 : vector<16xf32> to vector<16x1xf32>
    %cst_55 = arith.constant 3.200000e+01 : f32
    %229 = vector.broadcast %cst_55 : f32 to vector<16x1xf32>
    %230 = arith.divf %228, %229 : vector<16x1xf32>
    %cst_56 = arith.constant 9.99999974E-6 : f32
    %231 = vector.broadcast %cst_56 : f32 to vector<16x1xf32>
    %232 = arith.addf %230, %231 : vector<16x1xf32>
    %233 = math.rsqrt %232 : vector<16x1xf32>
    %234 = vector.broadcast %233 : vector<16x1xf32> to vector<16x32xf32>
    %235 = arith.mulf %225, %234 : vector<16x32xf32>
    %236 = vector.broadcast %149 : vector<1x32xf32> to vector<16x32xf32>
    %237 = arith.mulf %235, %236 : vector<16x32xf32>
    %238 = vector.broadcast %150 : vector<1x32xf32> to vector<16x32xf32>
    %239 = arith.addf %237, %238 : vector<16x32xf32>
    %c64 = arith.constant 64 : index
    %c0_57 = arith.constant 0 : index
    %240 = vector.load %arg2[%c64, %c0_57] : memref<352x128xbf16, #tpu.memory_space<vmem>>, vector<32x64xbf16>
    %c96 = arith.constant 96 : index
    %c0_58 = arith.constant 0 : index
    %241 = vector.load %arg2[%c96, %c0_58] : memref<352x128xbf16, #tpu.memory_space<vmem>>, vector<64x32xbf16>
    %242 = arith.truncf %239 : vector<16x32xf32> to vector<16x32xbf16>
    %cst_59 = arith.constant dense<0.000000e+00> : vector<16x64xf32>
    %243 = tpu.matmul %242, %240, %cst_59 {dimension_numbers = #tpu.dot_dimension_numbers<[1], [0], [0], [1], [0, 0, 1, 1], [], []>} : vector<16x32xbf16>, vector<32x64xbf16>, vector<16x64xf32> -> vector<16x64xf32>
    %244 = vector.broadcast %151 : vector<1x64xf32> to vector<16x64xf32>
    %245 = arith.addf %243, %244 : vector<16x64xf32>
    %cst_60 = arith.constant 0.000000e+00 : f32
    %246 = vector.broadcast %cst_60 : f32 to vector<16x64xf32>
    %247 = arith.maximumf %245, %246 : vector<16x64xf32>
    %248 = arith.truncf %247 : vector<16x64xf32> to vector<16x64xbf16>
    %cst_61 = arith.constant dense<0.000000e+00> : vector<16x32xf32>
    %249 = tpu.matmul %248, %241, %cst_61 {dimension_numbers = #tpu.dot_dimension_numbers<[1], [0], [0], [1], [0, 0, 1, 1], [], []>} : vector<16x64xbf16>, vector<64x32xbf16>, vector<16x32xf32> -> vector<16x32xf32>
    %250 = arith.addf %219, %249 : vector<16x32xf32>
    %251 = vector.broadcast %152 : vector<1x32xf32> to vector<16x32xf32>
    %252 = arith.addf %250, %251 : vector<16x32xf32>
    %c200 = arith.constant 200 : index
    %c0_62 = arith.constant 0 : index
    %253 = vector.load %arg3[%c200, %c0_62] : memref<216x128xf32, #tpu.memory_space<vmem>>, vector<8x128xf32>
    %254 = vector.extract_strided_slice %253 {offsets = [0, 0], sizes = [1, 32], strides = [1, 1]} : vector<8x128xf32> to vector<1x32xf32>
    %255 = vector.extract_strided_slice %253 {offsets = [1, 0], sizes = [1, 32], strides = [1, 1]} : vector<8x128xf32> to vector<1x32xf32>
    %256 = vector.extract_strided_slice %253 {offsets = [2, 0], sizes = [1, 128], strides = [1, 1]} : vector<8x128xf32> to vector<1x128xf32>
    %257 = vector.extract_strided_slice %253 {offsets = [3, 0], sizes = [1, 32], strides = [1, 1]} : vector<8x128xf32> to vector<1x32xf32>
    %258 = vector.extract_strided_slice %253 {offsets = [4, 0], sizes = [1, 32], strides = [1, 1]} : vector<8x128xf32> to vector<1x32xf32>
    %259 = vector.extract_strided_slice %253 {offsets = [5, 0], sizes = [1, 32], strides = [1, 1]} : vector<8x128xf32> to vector<1x32xf32>
    %260 = vector.extract_strided_slice %253 {offsets = [6, 0], sizes = [1, 64], strides = [1, 1]} : vector<8x128xf32> to vector<1x64xf32>
    %261 = vector.extract_strided_slice %253 {offsets = [7, 0], sizes = [1, 32], strides = [1, 1]} : vector<8x128xf32> to vector<1x32xf32>
    %cst_63 = arith.constant dense<0.000000e+00> : vector<16xf32>
    %262 = vector.multi_reduction <add>, %252, %cst_63 [1] : vector<16x32xf32> to vector<16xf32>
    %263 = vector.shape_cast %262 : vector<16xf32> to vector<16x1xf32>
    %cst_64 = arith.constant 3.200000e+01 : f32
    %264 = vector.broadcast %cst_64 : f32 to vector<16x1xf32>
    %265 = arith.divf %263, %264 : vector<16x1xf32>
    %266 = vector.broadcast %265 : vector<16x1xf32> to vector<16x32xf32>
    %267 = arith.subf %252, %266 : vector<16x32xf32>
    %268 = arith.mulf %267, %267 : vector<16x32xf32>
    %cst_65 = arith.constant dense<0.000000e+00> : vector<16xf32>
    %269 = vector.multi_reduction <add>, %268, %cst_65 [1] : vector<16x32xf32> to vector<16xf32>
    %270 = vector.shape_cast %269 : vector<16xf32> to vector<16x1xf32>
    %cst_66 = arith.constant 3.200000e+01 : f32
    %271 = vector.broadcast %cst_66 : f32 to vector<16x1xf32>
    %272 = arith.divf %270, %271 : vector<16x1xf32>
    %cst_67 = arith.constant 9.99999974E-6 : f32
    %273 = vector.broadcast %cst_67 : f32 to vector<16x1xf32>
    %274 = arith.addf %272, %273 : vector<16x1xf32>
    %275 = math.rsqrt %274 : vector<16x1xf32>
    %276 = vector.broadcast %275 : vector<16x1xf32> to vector<16x32xf32>
    %277 = arith.mulf %267, %276 : vector<16x32xf32>
    %278 = vector.broadcast %254 : vector<1x32xf32> to vector<16x32xf32>
    %279 = arith.mulf %277, %278 : vector<16x32xf32>
    %280 = vector.broadcast %255 : vector<1x32xf32> to vector<16x32xf32>
    %281 = arith.addf %279, %280 : vector<16x32xf32>
    %c160 = arith.constant 160 : index
    %c0_68 = arith.constant 0 : index
    %282 = vector.load %arg2[%c160, %c0_68] : memref<352x128xbf16, #tpu.memory_space<vmem>>, vector<32x128xbf16>
    %283 = arith.truncf %281 : vector<16x32xf32> to vector<16x32xbf16>
    %cst_69 = arith.constant dense<0.000000e+00> : vector<16x128xf32>
    %284 = tpu.matmul %283, %282, %cst_69 {dimension_numbers = #tpu.dot_dimension_numbers<[1], [0], [0], [1], [0, 0, 1, 1], [], []>} : vector<16x32xbf16>, vector<32x128xbf16>, vector<16x128xf32> -> vector<16x128xf32>
    %285 = vector.broadcast %256 : vector<1x128xf32> to vector<16x128xf32>
    %286 = arith.addf %284, %285 : vector<16x128xf32>
    %287 = vector.extract_strided_slice %286 {offsets = [0, 0], sizes = [16, 32], strides = [1, 1]} : vector<16x128xf32> to vector<16x32xf32>
    %288 = vector.extract_strided_slice %286 {offsets = [0, 32], sizes = [16, 32], strides = [1, 1]} : vector<16x128xf32> to vector<16x32xf32>
    %289 = vector.extract_strided_slice %286 {offsets = [0, 64], sizes = [16, 32], strides = [1, 1]} : vector<16x128xf32> to vector<16x32xf32>
    %290 = tpu.concatenate %287, %287, %287, %287 in 0 : vector<16x32xf32>, vector<16x32xf32>, vector<16x32xf32>, vector<16x32xf32> -> vector<64x32xf32>
    %291 = arith.mulf %290, %114 : vector<64x32xf32>
    %292 = tpu.transpose %288, [1, 0] : vector<16x32xf32> -> vector<32x16xf32>
    %cst_70 = arith.constant dense<0.000000e+00> : vector<64x16xf32>
    %293 = tpu.matmul %291, %292, %cst_70 {dimension_numbers = #tpu.dot_dimension_numbers<[1], [0], [0], [1], [0, 0, 1, 1], [], []>} : vector<64x32xf32>, vector<32x16xf32>, vector<64x16xf32> -> vector<64x16xf32>
    %294 = arith.addf %293, %55 : vector<64x16xf32>
    %cst_71 = arith.constant dense<0xFF800000> : vector<64xf32>
    %295 = vector.multi_reduction <maximumf>, %294, %cst_71 [1] : vector<64x16xf32> to vector<64xf32>
    %296 = vector.shape_cast %295 : vector<64xf32> to vector<64x1xf32>
    %297 = vector.broadcast %296 : vector<64x1xf32> to vector<64x16xf32>
    %298 = arith.subf %294, %297 : vector<64x16xf32>
    %299 = math.exp %298 : vector<64x16xf32>
    %cst_72 = arith.constant dense<0.000000e+00> : vector<64xf32>
    %300 = vector.multi_reduction <add>, %299, %cst_72 [1] : vector<64x16xf32> to vector<64xf32>
    %301 = vector.shape_cast %300 : vector<64xf32> to vector<64x1xf32>
    %302 = tpu.reciprocal %301 {approx = true} : vector<64x1xf32> -> vector<64x1xf32>
    %303 = vector.broadcast %302 : vector<64x1xf32> to vector<64x16xf32>
    %304 = arith.mulf %299, %303 : vector<64x16xf32>
    %cst_73 = arith.constant dense<0.000000e+00> : vector<64x32xf32>
    %305 = tpu.matmul %304, %289, %cst_73 {dimension_numbers = #tpu.dot_dimension_numbers<[1], [0], [0], [1], [0, 0, 1, 1], [], []>} : vector<64x16xf32>, vector<16x32xf32>, vector<64x32xf32> -> vector<64x32xf32>
    %cst_74 = arith.constant 0.000000e+00 : f32
    %306 = vector.broadcast %cst_74 : f32 to vector<16x32xf32>
    %307 = vector.extract_strided_slice %305 {offsets = [0, 0], sizes = [16, 32], strides = [1, 1]} : vector<64x32xf32> to vector<16x32xf32>
    %308 = vector.broadcast %122 : vector<1x32xf32> to vector<16x32xf32>
    %309 = arith.mulf %307, %308 : vector<16x32xf32>
    %310 = arith.addf %306, %309 : vector<16x32xf32>
    %311 = vector.extract_strided_slice %305 {offsets = [16, 0], sizes = [16, 32], strides = [1, 1]} : vector<64x32xf32> to vector<16x32xf32>
    %312 = vector.broadcast %129 : vector<1x32xf32> to vector<16x32xf32>
    %313 = arith.mulf %311, %312 : vector<16x32xf32>
    %314 = arith.addf %310, %313 : vector<16x32xf32>
    %315 = vector.extract_strided_slice %305 {offsets = [32, 0], sizes = [16, 32], strides = [1, 1]} : vector<64x32xf32> to vector<16x32xf32>
    %316 = vector.broadcast %136 : vector<1x32xf32> to vector<16x32xf32>
    %317 = arith.mulf %315, %316 : vector<16x32xf32>
    %318 = arith.addf %314, %317 : vector<16x32xf32>
    %319 = vector.extract_strided_slice %305 {offsets = [48, 0], sizes = [16, 32], strides = [1, 1]} : vector<64x32xf32> to vector<16x32xf32>
    %320 = vector.broadcast %143 : vector<1x32xf32> to vector<16x32xf32>
    %321 = arith.mulf %319, %320 : vector<16x32xf32>
    %322 = arith.addf %318, %321 : vector<16x32xf32>
    %c192_75 = arith.constant 192 : index
    %c0_76 = arith.constant 0 : index
    %323 = vector.load %arg2[%c192_75, %c0_76] : memref<352x128xbf16, #tpu.memory_space<vmem>>, vector<32x32xbf16>
    %324 = arith.truncf %322 : vector<16x32xf32> to vector<16x32xbf16>
    %cst_77 = arith.constant dense<0.000000e+00> : vector<16x32xf32>
    %325 = tpu.matmul %324, %323, %cst_77 {dimension_numbers = #tpu.dot_dimension_numbers<[1], [0], [0], [1], [0, 0, 1, 1], [], []>} : vector<16x32xbf16>, vector<32x32xbf16>, vector<16x32xf32> -> vector<16x32xf32>
    %326 = arith.addf %252, %325 : vector<16x32xf32>
    %327 = vector.broadcast %257 : vector<1x32xf32> to vector<16x32xf32>
    %328 = arith.addf %326, %327 : vector<16x32xf32>
    %cst_78 = arith.constant dense<0.000000e+00> : vector<16xf32>
    %329 = vector.multi_reduction <add>, %328, %cst_78 [1] : vector<16x32xf32> to vector<16xf32>
    %330 = vector.shape_cast %329 : vector<16xf32> to vector<16x1xf32>
    %cst_79 = arith.constant 3.200000e+01 : f32
    %331 = vector.broadcast %cst_79 : f32 to vector<16x1xf32>
    %332 = arith.divf %330, %331 : vector<16x1xf32>
    %333 = vector.broadcast %332 : vector<16x1xf32> to vector<16x32xf32>
    %334 = arith.subf %328, %333 : vector<16x32xf32>
    %335 = arith.mulf %334, %334 : vector<16x32xf32>
    %cst_80 = arith.constant dense<0.000000e+00> : vector<16xf32>
    %336 = vector.multi_reduction <add>, %335, %cst_80 [1] : vector<16x32xf32> to vector<16xf32>
    %337 = vector.shape_cast %336 : vector<16xf32> to vector<16x1xf32>
    %cst_81 = arith.constant 3.200000e+01 : f32
    %338 = vector.broadcast %cst_81 : f32 to vector<16x1xf32>
    %339 = arith.divf %337, %338 : vector<16x1xf32>
    %cst_82 = arith.constant 9.99999974E-6 : f32
    %340 = vector.broadcast %cst_82 : f32 to vector<16x1xf32>
    %341 = arith.addf %339, %340 : vector<16x1xf32>
    %342 = math.rsqrt %341 : vector<16x1xf32>
    %343 = vector.broadcast %342 : vector<16x1xf32> to vector<16x32xf32>
    %344 = arith.mulf %334, %343 : vector<16x32xf32>
    %345 = vector.broadcast %258 : vector<1x32xf32> to vector<16x32xf32>
    %346 = arith.mulf %344, %345 : vector<16x32xf32>
    %347 = vector.broadcast %259 : vector<1x32xf32> to vector<16x32xf32>
    %348 = arith.addf %346, %347 : vector<16x32xf32>
    %c224 = arith.constant 224 : index
    %c0_83 = arith.constant 0 : index
    %349 = vector.load %arg2[%c224, %c0_83] : memref<352x128xbf16, #tpu.memory_space<vmem>>, vector<32x64xbf16>
    %c256 = arith.constant 256 : index
    %c0_84 = arith.constant 0 : index
    %350 = vector.load %arg2[%c256, %c0_84] : memref<352x128xbf16, #tpu.memory_space<vmem>>, vector<64x32xbf16>
    %351 = arith.truncf %348 : vector<16x32xf32> to vector<16x32xbf16>
    %cst_85 = arith.constant dense<0.000000e+00> : vector<16x64xf32>
    %352 = tpu.matmul %351, %349, %cst_85 {dimension_numbers = #tpu.dot_dimension_numbers<[1], [0], [0], [1], [0, 0, 1, 1], [], []>} : vector<16x32xbf16>, vector<32x64xbf16>, vector<16x64xf32> -> vector<16x64xf32>
    %353 = vector.broadcast %260 : vector<1x64xf32> to vector<16x64xf32>
    %354 = arith.addf %352, %353 : vector<16x64xf32>
    %cst_86 = arith.constant 0.000000e+00 : f32
    %355 = vector.broadcast %cst_86 : f32 to vector<16x64xf32>
    %356 = arith.maximumf %354, %355 : vector<16x64xf32>
    %357 = arith.truncf %356 : vector<16x64xf32> to vector<16x64xbf16>
    %cst_87 = arith.constant dense<0.000000e+00> : vector<16x32xf32>
    %358 = tpu.matmul %357, %350, %cst_87 {dimension_numbers = #tpu.dot_dimension_numbers<[1], [0], [0], [1], [0, 0, 1, 1], [], []>} : vector<16x64xbf16>, vector<64x32xbf16>, vector<16x32xf32> -> vector<16x32xf32>
    %359 = arith.addf %328, %358 : vector<16x32xf32>
    %360 = vector.broadcast %261 : vector<1x32xf32> to vector<16x32xf32>
    %361 = arith.addf %359, %360 : vector<16x32xf32>
    %c208 = arith.constant 208 : index
    %c0_88 = arith.constant 0 : index
    %362 = vector.load %arg3[%c208, %c0_88] : memref<216x128xf32, #tpu.memory_space<vmem>>, vector<8x128xf32>
    %363 = vector.extract_strided_slice %362 {offsets = [0, 0], sizes = [1, 32], strides = [1, 1]} : vector<8x128xf32> to vector<1x32xf32>
    %364 = vector.extract_strided_slice %362 {offsets = [1, 0], sizes = [1, 32], strides = [1, 1]} : vector<8x128xf32> to vector<1x32xf32>
    %365 = vector.extract_strided_slice %362 {offsets = [2, 0], sizes = [1, 128], strides = [1, 1]} : vector<8x128xf32> to vector<1x128xf32>
    %cst_89 = arith.constant dense<0.000000e+00> : vector<16xf32>
    %366 = vector.multi_reduction <add>, %361, %cst_89 [1] : vector<16x32xf32> to vector<16xf32>
    %367 = vector.shape_cast %366 : vector<16xf32> to vector<16x1xf32>
    %cst_90 = arith.constant 3.200000e+01 : f32
    %368 = vector.broadcast %cst_90 : f32 to vector<16x1xf32>
    %369 = arith.divf %367, %368 : vector<16x1xf32>
    %370 = vector.broadcast %369 : vector<16x1xf32> to vector<16x32xf32>
    %371 = arith.subf %361, %370 : vector<16x32xf32>
    %372 = arith.mulf %371, %371 : vector<16x32xf32>
    %cst_91 = arith.constant dense<0.000000e+00> : vector<16xf32>
    %373 = vector.multi_reduction <add>, %372, %cst_91 [1] : vector<16x32xf32> to vector<16xf32>
    %374 = vector.shape_cast %373 : vector<16xf32> to vector<16x1xf32>
    %cst_92 = arith.constant 3.200000e+01 : f32
    %375 = vector.broadcast %cst_92 : f32 to vector<16x1xf32>
    %376 = arith.divf %374, %375 : vector<16x1xf32>
    %cst_93 = arith.constant 9.99999974E-6 : f32
    %377 = vector.broadcast %cst_93 : f32 to vector<16x1xf32>
    %378 = arith.addf %376, %377 : vector<16x1xf32>
    %379 = math.rsqrt %378 : vector<16x1xf32>
    %380 = vector.broadcast %379 : vector<16x1xf32> to vector<16x32xf32>
    %381 = arith.mulf %371, %380 : vector<16x32xf32>
    %382 = vector.broadcast %363 : vector<1x32xf32> to vector<16x32xf32>
    %383 = arith.mulf %381, %382 : vector<16x32xf32>
    %384 = vector.broadcast %364 : vector<1x32xf32> to vector<16x32xf32>
    %385 = arith.addf %383, %384 : vector<16x32xf32>
    %c320 = arith.constant 320 : index
    %c0_94 = arith.constant 0 : index
    %386 = vector.load %arg2[%c320, %c0_94] : memref<352x128xbf16, #tpu.memory_space<vmem>>, vector<32x128xbf16>
    %387 = arith.truncf %385 : vector<16x32xf32> to vector<16x32xbf16>
    %cst_95 = arith.constant dense<0.000000e+00> : vector<16x128xf32>
    %388 = tpu.matmul %387, %386, %cst_95 {dimension_numbers = #tpu.dot_dimension_numbers<[1], [0], [0], [1], [0, 0, 1, 1], [], []>} : vector<16x32xbf16>, vector<32x128xbf16>, vector<16x128xf32> -> vector<16x128xf32>
    %389 = vector.broadcast %365 : vector<1x128xf32> to vector<16x128xf32>
    %390 = arith.addf %388, %389 : vector<16x128xf32>
    %c0_96 = arith.constant 0 : index
    %c0_97 = arith.constant 0 : index
    %391 = vector.load %arg4[%c0_96, %c0_97] : memref<16x128xf32, #tpu.memory_space<vmem>>, vector<16x128xf32>
    tpu.vector_store %arg4[%c0_96, %c0_97], %390 {strides = array<i32>} : memref<16x128xf32, #tpu.memory_space<vmem>>, vector<16x128xf32>,
    return
  }
}

</mosaic_0001>

<llo_original>
// kernel: text_generator_forward.1
$region0: #{text_generator_forward.1}
  #allocation0 [shape = 'u32[]', space=smem, size = 0x4, offset = 0x4, fixed_abs, tag = 'smem constant byte address 0x4 - core index']
  #allocation1 [shape = 'u32[72,128]{1,0:T(1,128)}', space=vmem, size = 0x9000, scoped, tag = 'internal scratch']
  %s0 = inlined_call_operand.vmem [shape: s32[16,1], index: 0, kind: input, shape index: {}]
  %s1 = inlined_call_operand.vmem [shape: f32[1,16], index: 1, kind: input, shape index: {}]
  %s2 = inlined_call_operand.hbm [shape: bf16[352,128], index: 2, kind: input, shape index: {}]
  %s3 = inlined_call_operand.hbm [shape: f32[216,128], index: 3, kind: input, shape index: {}]
  %s4 = inlined_call_operand.hbm [shape: f32[16,128], index: 4, kind: output, shape index: {}]
  %s5 = sld [smem:[#allocation0]]
  $region34: #{text_generator_forward.1} parent=0
    _
  %s7 = ssub.s32 1, %s5
  %s8 = scalar_select 0, %s7, %s5
  $region1: #{text_generator_forward.1} parent=0
    #allocation2 [shape = 'u8[90112]{0}', space=vmem, size = 0x16000, scoped, tag = 'input window, operand 2, single buffered']
    #allocation3 [shape = 's32[1]{0}', space=sflag, size = 0x4, scoped, tag = 'scoped memory for text_generator_forward.1']
    #allocation4 [shape = 's32[1]{0}', space=sflag, size = 0x4, scoped, tag = 'scoped memory for text_generator_forward.1']
    #allocation5 [shape = 'u8[110592]{0}', space=vmem, size = 0x1b000, scoped, tag = 'input window, operand 3, single buffered']
    #allocation6 [shape = 's32[1]{0}', space=sflag, size = 0x4, scoped, tag = 'scoped memory for text_generator_forward.1']
    #allocation7 [shape = 'u8[8192]{0}', space=vmem, size = 0x2000, scoped, tag = 'output window, operand 0, single buffered']
    %9 = vsyncpa [#allocation3], 0
    %10 = vsyncpa [#allocation6], 0
    %11 = vsyncpa [#allocation4], 0
    // Predicated region
    $region2: #{text_generator_forward.1} parent=1 // pred_check
      _
    $region3: #{text_generator_forward.1} parent=1 // pred_check_branch
      %13 = sbr.rel (0) target = $region5
    $region4: #{text_generator_forward.1} parent=1 // pred_region
      _
    $region5: #{text_generator_forward.1} parent=1 // pred_fallthru
      _
    // Predicated region
    $region6: #{text_generator_forward.1} parent=1 // pred_check
      _
    $region7: #{text_generator_forward.1} parent=1 // pred_check_branch
      %15 = sbr.rel (0) target = $region9
    $region8: #{text_generator_forward.1} parent=1 // pred_region
      _
    $region9: #{text_generator_forward.1} parent=1 // pred_fallthru
      _
    // Predicated region
    $region10: #{text_generator_forward.1} parent=1 // pred_check
      _
    $region11: #{text_generator_forward.1} parent=1 // pred_check_branch
      %17 = sbr.rel (0) target = $region13
    $region12: #{text_generator_forward.1} parent=1 // pred_region
      %19 = vsyncadd [#allocation3], 0
      %s20 = sshll.u32 %s2, 4
      %s21 = int_to_ptr.hbm [resolvable:$true] %s20
      %s22 = sshll.u32 [#allocation2], 4
      %s23 = int_to_ptr.vmem [resolvable:$true] %s22
      %28 = dma.hbm_to_vmem [thread:$0]  %s21, 2816, %s23, [#allocation3], 64, 64, 4
    $region13: #{text_generator_forward.1} parent=1 // pred_fallthru
      _
    // Predicated region
    $region14: #{text_generator_forward.1} parent=1 // pred_check
      _
    $region15: #{text_generator_forward.1} parent=1 // pred_check_branch
      %30 = sbr.rel (0) target = $region17
    $region16: #{text_generator_forward.1} parent=1 // pred_region
      %32 = vsyncadd [#allocation6], 0
      %s33 = sshll.u32 %s3, 4
      %s34 = int_to_ptr.hbm [resolvable:$true] %s33
      %s35 = sshll.u32 [#allocation5], 4
      %s36 = int_to_ptr.vmem [resolvable:$true] %s35
      %41 = dma.hbm_to_vmem [thread:$0]  %s34, 3456, %s36, [#allocation6], 128, 128, 8
    $region17: #{text_generator_forward.1} parent=1 // pred_fallthru
      _
    // Predicated region
    $region18: #{text_generator_forward.1} parent=1 // pred_check
      _
    $region19: #{text_generator_forward.1} parent=1 // pred_check_branch
      %43 = sbr.rel (0) target = $region21
    $region20: #{text_generator_forward.1} parent=1 // pred_region
      %45 = dma.done [#allocation3], 2816
    $region21: #{text_generator_forward.1} parent=1 // pred_fallthru
      _
    // Predicated region
    $region22: #{text_generator_forward.1} parent=1 // pred_check
      _
    $region23: #{text_generator_forward.1} parent=1 // pred_check_branch
      %47 = sbr.rel (0) target = $region25
    $region24: #{text_generator_forward.1} parent=1 // pred_region
      %49 = dma.done [#allocation6], 3456
    $region25: #{text_generator_forward.1} parent=1 // pred_fallthru
      _
    %v51 = vld [vmem:[%s0] sm:$0xff]
    %v52 = vld [vmem:[%s0 + $0x8] sm:$0xff]
    %v53 = vlaneseq
    %v54 = vand.u32 %v53, 127
    %55 = vset.pattern.permute.xlu0 0
    %56 = vperm.xlu0 %55, %v51
    %v57 = vpop.permute.xlu0 %56
    %58 = vset.pattern.permute.xlu0 0
    %59 = vperm.xlu0 %58, %v52
    %v60 = vpop.permute.xlu0 %59
    %vm61 = vcmp.eq.s32.totalorder %v57, %v54
    %vm62 = vcmp.eq.s32.totalorder %v60, %v54
    %v63 = vsel %vm61, 1, 0
    %v64 = vsel %vm62, 1, 0
    %v65 = vcvt.s32.f32 %v63
    %v66 = vcvt.s32.f32 %v64
    %v67 = vld [vmem:[#allocation5] sm:$0xff]
    %v68 = vld [vmem:[#allocation5 + $0x8] sm:$0xff]
    %v69 = vld [vmem:[#allocation5 + $0x10] sm:$0xff]
    %v70 = vld [vmem:[#allocation5 + $0x18] sm:$0xff]
    %v71 = vld [vmem:[#allocation5 + $0x20] sm:$0xff]
    %v72 = vld [vmem:[#allocation5 + $0x28] sm:$0xff]
    %v73 = vld [vmem:[#allocation5 + $0x30] sm:$0xff]
    %v74 = vld [vmem:[#allocation5 + $0x38] sm:$0xff]
    %v75 = vld [vmem:[#allocation5 + $0x40] sm:$0xff]
    %v76 = vld [vmem:[#allocation5 + $0x48] sm:$0xff]
    %v77 = vld [vmem:[#allocation5 + $0x50] sm:$0xff]
    %v78 = vld [vmem:[#allocation5 + $0x58] sm:$0xff]
    %v79 = vld [vmem:[#allocation5 + $0x60] sm:$0xff]
    %v80 = vld [vmem:[#allocation5 + $0x68] sm:$0xff]
    %v81 = vld [vmem:[#allocation5 + $0x70] sm:$0xff]
    %v82 = vld [vmem:[#allocation5 + $0x78] sm:$0xff]
    %83 = vmatpush.msra.mxu0 %v82
    %84 = vmatpush.msra.mxu0 %v81
    %85 = vmatpush.msra.mxu0 %v80
    %86 = vmatpush.msra.mxu0 %v79
    %87 = vmatpush.msra.mxu0 %v78
    %88 = vmatpush.msra.mxu0 %v77
    %89 = vmatpush.msra.mxu0 %v76
    %90 = vmatpush.msra.mxu0 %v75
    %91 = vmatpush.msra.mxu0 %v74
    %92 = vmatpush.msra.mxu0 %v73
    %93 = vmatpush.msra.mxu0 %v72
    %94 = vmatpush.msra.mxu0 %v71
    %95 = vmatpush.msra.mxu0 %v70
    %96 = vmatpush.msra.mxu0 %v69
    %97 = vmatpush.msra.mxu0 %v68
    %98 = vmatpush.msra.mxu0 %v67
    %99 = vmatmul.f32.gmra.mxu0 %v65
    %v100 = vpop.f32.mrf.mxu0
    %v101 = vadd.f32 0.0, %v100
    %102 = vmatmul.f32.gmra.mxu0 %v66
    %v103 = vpop.f32.mrf.mxu0
    %v104 = vadd.f32 0.0, %v103
    %105 = vdwg.mxu0
    %v106 = vmul.f32 %v101, 5.656854
    %v107 = vmul.f32 %v104, 5.656854
    %v108 = vld [vmem:[#allocation5 + $0x80] sm:$0xff]
    %v109 = vadd.f32 %v106, %v108
    %v110 = vadd.f32 %v107, %v108
    %v111 = vlaneseq
    %v112 = vshrl.u32 %v111, 7
    %v113 = vadd.s32 %v112, 8
    %vm114 = vcmp.ge.s32.totalorder %v112, 0
    %vm115 = vcmp.ge.s32.totalorder %v113, 0
    %vm116 = vcmp.lt.s32.totalorder %v112, 8
    %vm117 = vcmp.lt.s32.totalorder %v113, 8
    %vm118 = vmand %vm114, %vm116
    %vm119 = vmand %vm115, %vm117
    %vm120 = vcmp.ge.s32.totalorder %v54, 0
    %vm121 = vmand %vm118, %vm120
    %vm122 = vmand %vm119, %vm120
    %vm123 = vcmp.lt.s32.totalorder %v54, 8
    %vm124 = vmand %vm121, %vm123
    %vm125 = vmand %vm122, %vm123
    %vm126 = vcmp.ge.s32.totalorder %v112, %v54
    %vm127 = vcmp.ge.s32.totalorder %v113, %v54
    %vm128 = vmand %vm124, %vm126
    %vm129 = vmand %vm125, %vm127
    %v130 = vsel %vm128, 1, 0
    %v131 = vsel %vm129, 1, 0
    %v132 = vcvt.s32.f32 %v130
    %v133 = vcvt.s32.f32 %v131
    %v134 = vadd.f32 %v132, 0.0
    %v135 = vadd.f32 %v133, 0.0
    %vm136 = vcmp.ge.s32.totalorder %v112, 8
    %vm137 = vcmp.ge.s32.totalorder %v113, 8
    %vm138 = vcmp.lt.s32.totalorder %v112, 16
    %vm139 = vcmp.lt.s32.totalorder %v113, 16
    %vm140 = vmand %vm136, %vm138
    %vm141 = vmand %vm137, %vm139
    %vm142 = vcmp.ge.s32.totalorder %v54, 8
    %vm143 = vmand %vm140, %vm142
    %vm144 = vmand %vm141, %vm142
    %vm145 = vcmp.lt.s32.totalorder %v54, 16
    %vm146 = vmand %vm143, %vm145
    %vm147 = vmand %vm144, %vm145
    %vm148 = vmand %vm146, %vm126
    %vm149 = vmand %vm147, %vm127
    %v150 = vsel %vm148, 1, 0
    %v151 = vsel %vm149, 1, 0
    %v152 = vcvt.s32.f32 %v150
    %v153 = vcvt.s32.f32 %v151
    %v154 = vadd.f32 %v134, %v152
    %v155 = vadd.f32 %v135, %v153
    %v156 = vld [vmem:[%s1] sm:$0x1]
    %v158 = vperm.slane %v156, 0
    %v160 = vmul.f32 %v154, %v158
    %v161 = vmul.f32 %v155, %v158
    %v162 = vsub.f32 %v160, 1.0
    %v163 = vsub.f32 %v161, 1.0
    %v164 = vmul.f32 %v162, 1e+09
    %v165 = vmul.f32 %v163, 1e+09
    %v166 = vadd.s32 %v112, 16
    %v167 = vadd.s32 %v112, 24
    %v168 = vadd.s32 %v112, 32
    %v169 = vadd.s32 %v112, 40
    %v170 = vadd.s32 %v112, 48
    %v171 = vadd.s32 %v112, 56
    %vm172 = vcmp.ge.s32.totalorder %v166, 0
    %vm173 = vcmp.ge.s32.totalorder %v167, 0
    %vm174 = vcmp.ge.s32.totalorder %v168, 0
    %vm175 = vcmp.ge.s32.totalorder %v169, 0
    %vm176 = vcmp.ge.s32.totalorder %v170, 0
    %vm177 = vcmp.ge.s32.totalorder %v171, 0
    %vm178 = vcmp.lt.s32.totalorder %v166, 16
    %vm179 = vcmp.lt.s32.totalorder %v167, 16
    %vm180 = vcmp.lt.s32.totalorder %v168, 16
    %vm181 = vcmp.lt.s32.totalorder %v169, 16
    %vm182 = vcmp.lt.s32.totalorder %v170, 16
    %vm183 = vcmp.lt.s32.totalorder %v171, 16
    %vm184 = vmand %vm114, %vm138
    %vm185 = vmand %vm115, %vm139
    %vm186 = vmand %vm172, %vm178
    %vm187 = vmand %vm173, %vm179
    %vm188 = vmand %vm174, %vm180
    %vm189 = vmand %vm175, %vm181
    %vm190 = vmand %vm176, %vm182
    %vm191 = vmand %vm177, %vm183
    %vm192 = vmand %vm184, %vm120
    %vm193 = vmand %vm185, %vm120
    %vm194 = vmand %vm186, %vm120
    %vm195 = vmand %vm187, %vm120
    %vm196 = vmand %vm188, %vm120
    %vm197 = vmand %vm189, %vm120
    %vm198 = vmand %vm190, %vm120
    %vm199 = vmand %vm191, %vm120
    %vm200 = vmand %vm192, %vm123
    %vm201 = vmand %vm193, %vm123
    %vm202 = vmand %vm194, %vm123
    %vm203 = vmand %vm195, %vm123
    %vm204 = vmand %vm196, %vm123
    %vm205 = vmand %vm197, %vm123
    %vm206 = vmand %vm198, %vm123
    %vm207 = vmand %vm199, %vm123
    %v208 = vsel %vm200, 1, 0
    %v209 = vsel %vm201, 1, 0
    %v210 = vsel %vm202, 1, 0
    %v211 = vsel %vm203, 1, 0
    %v212 = vsel %vm204, 1, 0
    %v213 = vsel %vm205, 1, 0
    %v214 = vsel %vm206, 1, 0
    %v215 = vsel %vm207, 1, 0
    %v216 = vcvt.s32.f32 %v208
    %v217 = vcvt.s32.f32 %v209
    %v218 = vcvt.s32.f32 %v210
    %v219 = vcvt.s32.f32 %v211
    %v220 = vcvt.s32.f32 %v212
    %v221 = vcvt.s32.f32 %v213
    %v222 = vcvt.s32.f32 %v214
    %v223 = vcvt.s32.f32 %v215
    %v224 = vadd.f32 %v216, 0.0
    %v225 = vadd.f32 %v217, 0.0
    %v226 = vadd.f32 %v218, 0.0
    %v227 = vadd.f32 %v219, 0.0
    %v228 = vadd.f32 %v220, 0.0
    %v229 = vadd.f32 %v221, 0.0
    %v230 = vadd.f32 %v222, 0.0
    %v231 = vadd.f32 %v223, 0.0
    %vm232 = vcmp.ge.s32.totalorder %v112, 16
    %vm233 = vcmp.ge.s32.totalorder %v113, 16
    %vm234 = vcmp.ge.s32.totalorder %v166, 16
    %vm235 = vcmp.ge.s32.totalorder %v167, 16
    %vm236 = vcmp.ge.s32.totalorder %v168, 16
    %vm237 = vcmp.ge.s32.totalorder %v169, 16
    %vm238 = vcmp.ge.s32.totalorder %v170, 16
    %vm239 = vcmp.ge.s32.totalorder %v171, 16
    %vm240 = vcmp.lt.s32.totalorder %v112, 32
    %vm241 = vcmp.lt.s32.totalorder %v113, 32
    %vm242 = vcmp.lt.s32.totalorder %v166, 32
    %vm243 = vcmp.lt.s32.totalorder %v167, 32
    %vm244 = vcmp.lt.s32.totalorder %v168, 32
    %vm245 = vcmp.lt.s32.totalorder %v169, 32
    %vm246 = vcmp.lt.s32.totalorder %v170, 32
    %vm247 = vcmp.lt.s32.totalorder %v171, 32
    %vm248 = vmand %vm232, %vm240
    %vm249 = vmand %vm233, %vm241
    %vm250 = vmand %vm234, %vm242
    %vm251 = vmand %vm235, %vm243
    %vm252 = vmand %vm236, %vm244
    %vm253 = vmand %vm237, %vm245
    %vm254 = vmand %vm238, %vm246
    %vm255 = vmand %vm239, %vm247
    %vm256 = vmand %vm248, %vm142
    %vm257 = vmand %vm249, %vm142
    %vm258 = vmand %vm250, %vm142
    %vm259 = vmand %vm251, %vm142
    %vm260 = vmand %vm252, %vm142
    %vm261 = vmand %vm253, %vm142
    %vm262 = vmand %vm254, %vm142
    %vm263 = vmand %vm255, %vm142
    %vm264 = vmand %vm256, %vm145
    %vm265 = vmand %vm257, %vm145
    %vm266 = vmand %vm258, %vm145
    %vm267 = vmand %vm259, %vm145
    %vm268 = vmand %vm260, %vm145
    %vm269 = vmand %vm261, %vm145
    %vm270 = vmand %vm262, %vm145
    %vm271 = vmand %vm263, %vm145
    %v272 = vsel %vm264, 1, 0
    %v273 = vsel %vm265, 1, 0
    %v274 = vsel %vm266, 1, 0
    %v275 = vsel %vm267, 1, 0
    %v276 = vsel %vm268, 1, 0
    %v277 = vsel %vm269, 1, 0
    %v278 = vsel %vm270, 1, 0
    %v279 = vsel %vm271, 1, 0
    %v280 = vcvt.s32.f32 %v272
    %v281 = vcvt.s32.f32 %v273
    %v282 = vcvt.s32.f32 %v274
    %v283 = vcvt.s32.f32 %v275
    %v284 = vcvt.s32.f32 %v276
    %v285 = vcvt.s32.f32 %v277
    %v286 = vcvt.s32.f32 %v278
    %v287 = vcvt.s32.f32 %v279
    %v288 = vadd.f32 %v224, %v280
    %v289 = vadd.f32 %v225, %v281
    %v290 = vadd.f32 %v226, %v282
    %v291 = vadd.f32 %v227, %v283
    %v292 = vadd.f32 %v228, %v284
    %v293 = vadd.f32 %v229, %v285
    %v294 = vadd.f32 %v230, %v286
    %v295 = vadd.f32 %v231, %v287
    %vm296 = vcmp.ge.s32.totalorder %v112, 32
    %vm297 = vcmp.ge.s32.totalorder %v113, 32
    %vm298 = vcmp.ge.s32.totalorder %v166, 32
    %vm299 = vcmp.ge.s32.totalorder %v167, 32
    %vm300 = vcmp.ge.s32.totalorder %v168, 32
    %vm301 = vcmp.ge.s32.totalorder %v169, 32
    %vm302 = vcmp.ge.s32.totalorder %v170, 32
    %vm303 = vcmp.ge.s32.totalorder %v171, 32
    %vm304 = vcmp.lt.s32.totalorder %v112, 48
    %vm305 = vcmp.lt.s32.totalorder %v113, 48
    %vm306 = vcmp.lt.s32.totalorder %v166, 48
    %vm307 = vcmp.lt.s32.totalorder %v167, 48
    %vm308 = vcmp.lt.s32.totalorder %v168, 48
    %vm309 = vcmp.lt.s32.totalorder %v169, 48
    %vm310 = vcmp.lt.s32.totalorder %v170, 48
    %vm311 = vcmp.lt.s32.totalorder %v171, 48
    %vm312 = vmand %vm296, %vm304
    %vm313 = vmand %vm297, %vm305
    %vm314 = vmand %vm298, %vm306
    %vm315 = vmand %vm299, %vm307
    %vm316 = vmand %vm300, %vm308
    %vm317 = vmand %vm301, %vm309
    %vm318 = vmand %vm302, %vm310
    %vm319 = vmand %vm303, %vm311
    %vm320 = vcmp.ge.s32.totalorder %v54, 16
    %vm321 = vmand %vm312, %vm320
    %vm322 = vmand %vm313, %vm320
    %vm323 = vmand %vm314, %vm320
    %vm324 = vmand %vm315, %vm320
    %vm325 = vmand %vm316, %vm320
    %vm326 = vmand %vm317, %vm320
    %vm327 = vmand %vm318, %vm320
    %vm328 = vmand %vm319, %vm320
    %vm329 = vcmp.lt.s32.totalorder %v54, 24
    %vm330 = vmand %vm321, %vm329
    %vm331 = vmand %vm322, %vm329
    %vm332 = vmand %vm323, %vm329
    %vm333 = vmand %vm324, %vm329
    %vm334 = vmand %vm325, %vm329
    %vm335 = vmand %vm326, %vm329
    %vm336 = vmand %vm327, %vm329
    %vm337 = vmand %vm328, %vm329
    %v338 = vsel %vm330, 1, 0
    %v339 = vsel %vm331, 1, 0
    %v340 = vsel %vm332, 1, 0
    %v341 = vsel %vm333, 1, 0
    %v342 = vsel %vm334, 1, 0
    %v343 = vsel %vm335, 1, 0
    %v344 = vsel %vm336, 1, 0
    %v345 = vsel %vm337, 1, 0
    %v346 = vcvt.s32.f32 %v338
    %v347 = vcvt.s32.f32 %v339
    %v348 = vcvt.s32.f32 %v340
    %v349 = vcvt.s32.f32 %v341
    %v350 = vcvt.s32.f32 %v342
    %v351 = vcvt.s32.f32 %v343
    %v352 = vcvt.s32.f32 %v344
    %v353 = vcvt.s32.f32 %v345
    %v354 = vadd.f32 %v288, %v346
    %v355 = vadd.f32 %v289, %v347
    %v356 = vadd.f32 %v290, %v348
    %v357 = vadd.f32 %v291, %v349
    %v358 = vadd.f32 %v292, %v350
    %v359 = vadd.f32 %v293, %v351
    %v360 = vadd.f32 %v294, %v352
    %v361 = vadd.f32 %v295, %v353
    %vm362 = vcmp.ge.s32.totalorder %v112, 48
    %vm363 = vcmp.ge.s32.totalorder %v113, 48
    %vm364 = vcmp.ge.s32.totalorder %v166, 48
    %vm365 = vcmp.ge.s32.totalorder %v167, 48
    %vm366 = vcmp.ge.s32.totalorder %v168, 48
    %vm367 = vcmp.ge.s32.totalorder %v169, 48
    %vm368 = vcmp.ge.s32.totalorder %v170, 48
    %vm369 = vcmp.ge.s32.totalorder %v171, 48
    %vm370 = vcmp.lt.s32.totalorder %v112, 64
    %vm371 = vcmp.lt.s32.totalorder %v113, 64
    %vm372 = vcmp.lt.s32.totalorder %v166, 64
    %vm373 = vcmp.lt.s32.totalorder %v167, 64
    %vm374 = vcmp.lt.s32.totalorder %v168, 64
    %vm375 = vcmp.lt.s32.totalorder %v169, 64
    %vm376 = vcmp.lt.s32.totalorder %v170, 64
    %vm377 = vcmp.lt.s32.totalorder %v171, 64
    %vm378 = vmand %vm362, %vm370
    %vm379 = vmand %vm363, %vm371
    %vm380 = vmand %vm364, %vm372
    %vm381 = vmand %vm365, %vm373
    %vm382 = vmand %vm366, %vm374
    %vm383 = vmand %vm367, %vm375
    %vm384 = vmand %vm368, %vm376
    %vm385 = vmand %vm369, %vm377
    %vm386 = vcmp.ge.s32.totalorder %v54, 24
    %vm387 = vmand %vm378, %vm386
    %vm388 = vmand %vm379, %vm386
    %vm389 = vmand %vm380, %vm386
    %vm390 = vmand %vm381, %vm386
    %vm391 = vmand %vm382, %vm386
    %vm392 = vmand %vm383, %vm386
    %vm393 = vmand %vm384, %vm386
    %vm394 = vmand %vm385, %vm386
    %vm395 = vcmp.lt.s32.totalorder %v54, 32
    %vm396 = vmand %vm387, %vm395
    %vm397 = vmand %vm388, %vm395
    %vm398 = vmand %vm389, %vm395
    %vm399 = vmand %vm390, %vm395
    %vm400 = vmand %vm391, %vm395
    %vm401 = vmand %vm392, %vm395
    %vm402 = vmand %vm393, %vm395
    %vm403 = vmand %vm394, %vm395
    %v404 = vsel %vm396, 1, 0
    %v405 = vsel %vm397, 1, 0
    %v406 = vsel %vm398, 1, 0
    %v407 = vsel %vm399, 1, 0
    %v408 = vsel %vm400, 1, 0
    %v409 = vsel %vm401, 1, 0
    %v410 = vsel %vm402, 1, 0
    %v411 = vsel %vm403, 1, 0
    %v412 = vcvt.s32.f32 %v404
    %v413 = vcvt.s32.f32 %v405
    %v414 = vcvt.s32.f32 %v406
    %v415 = vcvt.s32.f32 %v407
    %v416 = vcvt.s32.f32 %v408
    %v417 = vcvt.s32.f32 %v409
    %v418 = vcvt.s32.f32 %v410
    %v419 = vcvt.s32.f32 %v411
    %v420 = vadd.f32 %v354, %v412
    %v421 = vadd.f32 %v355, %v413
    %v422 = vadd.f32 %v356, %v414
    %v423 = vadd.f32 %v357, %v415
    %v424 = vadd.f32 %v358, %v416
    %v425 = vadd.f32 %v359, %v417
    %v426 = vadd.f32 %v360, %v418
    %v427 = vadd.f32 %v361, %v419
    %vm428 = vmand %vm120, %vm123
    %v429 = vsel %vm428, 1, 0
    %v430 = vcvt.s32.f32 %v429
    %vm431 = vmand %vm142, %vm145
    %v432 = vsel %vm431, 1, 0
    %v433 = vcvt.s32.f32 %v432
    %vm434 = vmand %vm320, %vm329
    %v435 = vsel %vm434, 1, 0
    %v436 = vcvt.s32.f32 %v435
    %vm437 = vmand %vm386, %vm395
    %v438 = vsel %vm437, 1, 0
    %v439 = vcvt.s32.f32 %v438
    %v440 = vld [vmem:[#allocation5 + $0xc0] sm:$0xff]
    %vm441 = vcmask 261120
    %v442 = vsel %vm441, %v109, 0.0
    %443 = vadd.xlane.f32.xlu0 %v442
    %v444 = vpop.xlane.xlu0 %443
    %v445 = vsel %vm441, %v110, 0.0
    %446 = vadd.xlane.f32.xlu0 %v445
    %v447 = vpop.xlane.xlu0 %446
    %v448 = vrcp.pop 32.0
    %v449 = vmul.f32 32.0, %v448
    %v450 = vsub.f32 1.0, %v449
    %v451 = vmul.f32 %v448, %v450
    %v452 = vadd.f32 %v448, %v451
    %vm453 = vweird.f32 %v448
    %v454 = vsel %vm453, %v448, %v452
    %v455 = vmul.f32 %v444, %v454
    %v456 = vmul.f32 %v447, %v454
    %v457 = vsub.f32 %v109, %v455
    %v458 = vsub.f32 %v110, %v456
    %v459 = vmul.f32 %v457, %v457
    %v460 = vmul.f32 %v458, %v458
    %v461 = vsel %vm441, %v459, 0.0
    %462 = vadd.xlane.f32.xlu0 %v461
    %v463 = vpop.xlane.xlu0 %462
    %v464 = vsel %vm441, %v460, 0.0
    %465 = vadd.xlane.f32.xlu0 %v464
    %v466 = vpop.xlane.xlu0 %465
    %v467 = vmul.f32 %v463, %v454
    %v468 = vmul.f32 %v466, %v454
    %v469 = vadd.f32 %v467, 1e-05
    %v470 = vadd.f32 %v468, 1e-05
    %v471 = vrsqrt.pop %v469
    %v472 = vmul.f32 %v471, %v469
    %v473 = vmul.f32 %v472, %v471
    %v474 = vmul.f32 0.5, %v473
    %v475 = vsub.f32 1.5, %v474
    %v476 = vmul.f32 %v471, %v475
    %vm477 = vweird.f32 %v469
    %vm478 = vweird.f32 %v471
    %vm479 = vmor %vm477, %vm478
    %v480 = vsel %vm479, %v471, %v476
    %v481 = vrsqrt.pop %v470
    %v482 = vmul.f32 %v481, %v470
    %v483 = vmul.f32 %v482, %v481
    %v484 = vmul.f32 0.5, %v483
    %v485 = vsub.f32 1.5, %v484
    %v486 = vmul.f32 %v481, %v485
    %vm487 = vweird.f32 %v470
    %vm488 = vweird.f32 %v481
    %vm489 = vmor %vm487, %vm488
    %v490 = vsel %vm489, %v481, %v486
    %v491 = vmul.f32 %v457, %v480
    %v492 = vmul.f32 %v458, %v490
    %v493 = vperm.slane %v440, 0
    %v494 = vmul.f32 %v491, %v493
    %v495 = vmul.f32 %v492, %v493
    %v496 = vperm.slane %v440, 1
    %v497 = vadd.f32 %v494, %v496
    %v498 = vadd.f32 %v495, %v496
    %v499 = vld [vmem:[#allocation2] sm:$0xf]
    %v500 = vld [vmem:[#allocation2 + $0x4] sm:$0xf]
    %v501 = vld [vmem:[#allocation2 + $0x8] sm:$0xf]
    %v502 = vld [vmem:[#allocation2 + $0xc] sm:$0xf]
    %v503 = vpack.c.bf16 %v498, %v497
    %v504 = vperm.slane %v440, 2
    %v509 = vunpack.c.l.b16 %v499
    %v510 = vunpack.c.l.b16 %v500
    %v511 = vunpack.c.l.b16 %v501
    %v512 = vunpack.c.l.b16 %v502
    %v513 = vpack.c.b16 %v510, %v509
    %v514 = vpack.c.b16 %v512, %v511
    %v518 = vsel %vm441, %v503, 0
    %520 = vmatpush.bf16.msra.mxu0 0
    %521 = vmatpush.bf16.msra.mxu0 0
    %522 = vmatpush.bf16.msra.mxu0 0
    %523 = vmatpush.bf16.msra.mxu0 0
    %524 = vmatpush.bf16.msra.mxu0 0
    %525 = vmatpush.bf16.msra.mxu0 0
    %526 = vmatpush.bf16.msra.mxu0 %v514
    %527 = vmatpush.bf16.msra.mxu0 %v513
    %528 = vmatmul.bf16.gmra.mxu0 %v518
    %v529 = vpop.f32.mrf.mxu0
    %v530 = vadd.f32 %v504, %v529
    %v531 = vpop.f32.mrf.mxu0
    %v532 = vadd.f32 %v504, %v531
    %533 = vdwg.mxu0
    %v534 = vmul.f32 %v530, %v420
    %v535 = vmul.f32 %v532, %v421
    %v536 = vmul.f32 %v530, %v422
    %v537 = vmul.f32 %v532, %v423
    %v538 = vmul.f32 %v530, %v424
    %v539 = vmul.f32 %v532, %v425
    %v540 = vmul.f32 %v530, %v426
    %v541 = vmul.f32 %v532, %v427
    %544 = vrot.lane.b32.xlu0 %v530, 96
    %v545 = vpop.permute.xlu0 %544
    %546 = vrot.lane.b32.xlu0 %v532, 96
    %v547 = vpop.permute.xlu0 %546
    %v549 = vsel %vm441, %v534, 0
    %v552 = vsel %vm441, %v535, 0
    %v555 = vsel %vm441, %v536, 0
    %v558 = vsel %vm441, %v537, 0
    %v561 = vsel %vm441, %v538, 0
    %v564 = vsel %vm441, %v539, 0
    %v567 = vsel %vm441, %v540, 0
    %v570 = vsel %vm441, %v541, 0
    %v572 = vsel %vm441, %v545, 0
    %v574 = vsel %vm441, %v547, 0
    %576 = vmatpush.xpose.msra.mxu0 0.0
    %577 = vmatpush.xpose.msra.mxu0 0.0
    %578 = vmatpush.xpose.msra.mxu0 0.0
    %579 = vmatpush.xpose.msra.mxu0 0.0
    %580 = vmatpush.xpose.msra.mxu0 0.0
    %581 = vmatpush.xpose.msra.mxu0 0.0
    %582 = vmatpush.xpose.msra.mxu0 0.0
    %583 = vmatpush.xpose.msra.mxu0 0.0
    %584 = vmatpush.xpose.msra.mxu0 0.0
    %585 = vmatpush.xpose.msra.mxu0 0.0
    %586 = vmatpush.xpose.msra.mxu0 0.0
    %587 = vmatpush.xpose.msra.mxu0 0.0
    %588 = vmatpush.xpose.msra.mxu0 0.0
    %589 = vmatpush.xpose.msra.mxu0 0.0
    %590 = vmatpush.xpose.msra.mxu0 %v574
    %591 = vmatpush.xpose.msra.mxu0 %v572
    %592 = vmatmul.f32.gmra.mxu0 %v549
    %v593 = vpop.f32.mrf.mxu0
    %v594 = vadd.f32 %v164, %v593
    %595 = vmatmul.f32.gmra.mxu0 %v552
    %v596 = vpop.f32.mrf.mxu0
    %v597 = vadd.f32 %v165, %v596
    %598 = vmatmul.f32.gmra.mxu0 %v555
    %v599 = vpop.f32.mrf.mxu0
    %v600 = vadd.f32 %v164, %v599
    %601 = vmatmul.f32.gmra.mxu0 %v558
    %v602 = vpop.f32.mrf.mxu0
    %v603 = vadd.f32 %v165, %v602
    %604 = vmatmul.f32.gmra.mxu0 %v561
    %v605 = vpop.f32.mrf.mxu0
    %v606 = vadd.f32 %v164, %v605
    %607 = vmatmul.f32.gmra.mxu0 %v564
    %v608 = vpop.f32.mrf.mxu0
    %v609 = vadd.f32 %v165, %v608
    %610 = vmatmul.f32.gmra.mxu0 %v567
    %v611 = vpop.f32.mrf.mxu0
    %v612 = vadd.f32 %v164, %v611
    %613 = vmatmul.f32.gmra.mxu0 %v570
    %v614 = vpop.f32.mrf.mxu0
    %v615 = vadd.f32 %v165, %v614
    %616 = vdwg.mxu0
    %vm617 = vcmask 130048
    %v618 = vsel %vm617, %v594, -inf
    %619 = vmax.xlane.f32.xlu0 %v618
    %v620 = vpop.xlane.xlu0 %619
    %v621 = vsel %vm617, %v597, -inf
    %622 = vmax.xlane.f32.xlu0 %v621
    %v623 = vpop.xlane.xlu0 %622
    %v624 = vsel %vm617, %v600, -inf
    %625 = vmax.xlane.f32.xlu0 %v624
    %v626 = vpop.xlane.xlu0 %625
    %v627 = vsel %vm617, %v603, -inf
    %628 = vmax.xlane.f32.xlu0 %v627
    %v629 = vpop.xlane.xlu0 %628
    %v630 = vsel %vm617, %v606, -inf
    %631 = vmax.xlane.f32.xlu0 %v630
    %v632 = vpop.xlane.xlu0 %631
    %v633 = vsel %vm617, %v609, -inf
    %634 = vmax.xlane.f32.xlu0 %v633
    %v635 = vpop.xlane.xlu0 %634
    %v636 = vsel %vm617, %v612, -inf
    %637 = vmax.xlane.f32.xlu0 %v636
    %v638 = vpop.xlane.xlu0 %637
    %v639 = vsel %vm617, %v615, -inf
    %640 = vmax.xlane.f32.xlu0 %v639
    %v641 = vpop.xlane.xlu0 %640
    %v642 = vsub.f32 %v594, %v620
    %v643 = vsub.f32 %v597, %v623
    %v644 = vsub.f32 %v600, %v626
    %v645 = vsub.f32 %v603, %v629
    %v646 = vsub.f32 %v606, %v632
    %v647 = vsub.f32 %v609, %v635
    %v648 = vsub.f32 %v612, %v638
    %v649 = vsub.f32 %v615, %v641
    %v650 = vmul.f32 %v642, 1.442695
    %v651 = vpow.pop %v650
    %v652 = vmul.f32 %v643, 1.442695
    %v653 = vpow.pop %v652
    %v654 = vmul.f32 %v644, 1.442695
    %v655 = vpow.pop %v654
    %v656 = vmul.f32 %v645, 1.442695
    %v657 = vpow.pop %v656
    %v658 = vmul.f32 %v646, 1.442695
    %v659 = vpow.pop %v658
    %v660 = vmul.f32 %v647, 1.442695
    %v661 = vpow.pop %v660
    %v662 = vmul.f32 %v648, 1.442695
    %v663 = vpow.pop %v662
    %v664 = vmul.f32 %v649, 1.442695
    %v665 = vpow.pop %v664
    %v666 = vsel %vm617, %v651, 0.0
    %667 = vadd.xlane.f32.xlu0 %v666
    %v668 = vpop.xlane.xlu0 %667
    %v669 = vsel %vm617, %v653, 0.0
    %670 = vadd.xlane.f32.xlu0 %v669
    %v671 = vpop.xlane.xlu0 %670
    %v672 = vsel %vm617, %v655, 0.0
    %673 = vadd.xlane.f32.xlu0 %v672
    %v674 = vpop.xlane.xlu0 %673
    %v675 = vsel %vm617, %v657, 0.0
    %676 = vadd.xlane.f32.xlu0 %v675
    %v677 = vpop.xlane.xlu0 %676
    %v678 = vsel %vm617, %v659, 0.0
    %679 = vadd.xlane.f32.xlu0 %v678
    %v680 = vpop.xlane.xlu0 %679
    %v681 = vsel %vm617, %v661, 0.0
    %682 = vadd.xlane.f32.xlu0 %v681
    %v683 = vpop.xlane.xlu0 %682
    %v684 = vsel %vm617, %v663, 0.0
    %685 = vadd.xlane.f32.xlu0 %v684
    %v686 = vpop.xlane.xlu0 %685
    %v687 = vsel %vm617, %v665, 0.0
    %688 = vadd.xlane.f32.xlu0 %v687
    %v689 = vpop.xlane.xlu0 %688
    %v690 = vrcp.pop %v668
    %v691 = vrcp.pop %v671
    %v692 = vrcp.pop %v674
    %v693 = vrcp.pop %v677
    %v694 = vrcp.pop %v680
    %v695 = vrcp.pop %v683
    %v696 = vrcp.pop %v686
    %v697 = vrcp.pop %v689
    %v698 = vmul.f32 %v651, %v690
    %v699 = vmul.f32 %v653, %v691
    %v700 = vmul.f32 %v655, %v692
    %v701 = vmul.f32 %v657, %v693
    %v702 = vmul.f32 %v659, %v694
    %v703 = vmul.f32 %v661, %v695
    %v704 = vmul.f32 %v663, %v696
    %v705 = vmul.f32 %v665, %v697
    %706 = vrot.lane.b32.xlu0 %v530, 64
    %v707 = vpop.permute.xlu0 %706
    %708 = vrot.lane.b32.xlu0 %v532, 64
    %v709 = vpop.permute.xlu0 %708
    %v713 = vsel %vm617, %v698, 0
    %v716 = vsel %vm617, %v699, 0
    %v719 = vsel %vm617, %v700, 0
    %v722 = vsel %vm617, %v701, 0
    %v725 = vsel %vm617, %v702, 0
    %v728 = vsel %vm617, %v703, 0
    %v731 = vsel %vm617, %v704, 0
    %v734 = vsel %vm617, %v705, 0
    %736 = vmatpush.msra.mxu0 0.0
    %737 = vmatpush.msra.mxu0 0.0
    %738 = vmatpush.msra.mxu0 0.0
    %739 = vmatpush.msra.mxu0 0.0
    %740 = vmatpush.msra.mxu0 0.0
    %741 = vmatpush.msra.mxu0 0.0
    %742 = vmatpush.msra.mxu0 0.0
    %743 = vmatpush.msra.mxu0 0.0
    %744 = vmatpush.msra.mxu0 0.0
    %745 = vmatpush.msra.mxu0 0.0
    %746 = vmatpush.msra.mxu0 0.0
    %747 = vmatpush.msra.mxu0 0.0
    %748 = vmatpush.msra.mxu0 0.0
    %749 = vmatpush.msra.mxu0 0.0
    %750 = vmatpush.msra.mxu0 %v709
    %751 = vmatpush.msra.mxu0 %v707
    %752 = vmatmul.f32.gmra.mxu0 %v713
    %v753 = vpop.f32.mrf.mxu0
    %v754 = vadd.f32 0.0, %v753
    %755 = vmatmul.f32.gmra.mxu0 %v716
    %v756 = vpop.f32.mrf.mxu0
    %v757 = vadd.f32 0.0, %v756
    %758 = vmatmul.f32.gmra.mxu0 %v719
    %v759 = vpop.f32.mrf.mxu0
    %v760 = vadd.f32 0.0, %v759
    %761 = vmatmul.f32.gmra.mxu0 %v722
    %v762 = vpop.f32.mrf.mxu0
    %v763 = vadd.f32 0.0, %v762
    %764 = vmatmul.f32.gmra.mxu0 %v725
    %v765 = vpop.f32.mrf.mxu0
    %v766 = vadd.f32 0.0, %v765
    %767 = vmatmul.f32.gmra.mxu0 %v728
    %v768 = vpop.f32.mrf.mxu0
    %v769 = vadd.f32 0.0, %v768
    %770 = vmatmul.f32.gmra.mxu0 %v731
    %v771 = vpop.f32.mrf.mxu0
    %v772 = vadd.f32 0.0, %v771
    %773 = vmatmul.f32.gmra.mxu0 %v734
    %v774 = vpop.f32.mrf.mxu0
    %v775 = vadd.f32 0.0, %v774
    %776 = vdwg.mxu0
    %v777 = vmul.f32 %v754, %v430
    %v778 = vmul.f32 %v757, %v430
    %v779 = vadd.f32 %v777, 0.0
    %v780 = vadd.f32 %v778, 0.0
    %v781 = vmul.f32 %v760, %v433
    %v782 = vmul.f32 %v763, %v433
    %v783 = vadd.f32 %v779, %v781
    %v784 = vadd.f32 %v780, %v782
    %v785 = vmul.f32 %v766, %v436
    %v786 = vmul.f32 %v769, %v436
    %v787 = vadd.f32 %v783, %v785
    %v788 = vadd.f32 %v784, %v786
    %v789 = vmul.f32 %v772, %v439
    %v790 = vmul.f32 %v775, %v439
    %v791 = vadd.f32 %v787, %v789
    %v792 = vadd.f32 %v788, %v790
    %v793 = vld [vmem:[#allocation2 + $0x10] sm:$0xf]
    %v794 = vld [vmem:[#allocation2 + $0x14] sm:$0xf]
    %v795 = vld [vmem:[#allocation2 + $0x18] sm:$0xf]
    %v796 = vld [vmem:[#allocation2 + $0x1c] sm:$0xf]
    %v797 = vpack.c.bf16 %v792, %v791
    %v802 = vunpack.c.l.b16 %v793
    %v803 = vunpack.c.l.b16 %v794
    %v804 = vunpack.c.l.b16 %v795
    %v805 = vunpack.c.l.b16 %v796
    %v806 = vpack.c.b16 %v803, %v802
    %v807 = vpack.c.b16 %v805, %v804
    %v811 = vsel %vm441, %v797, 0
    %813 = vmatpush.bf16.msra.mxu0 0
    %814 = vmatpush.bf16.msra.mxu0 0
    %815 = vmatpush.bf16.msra.mxu0 0
    %816 = vmatpush.bf16.msra.mxu0 0
    %817 = vmatpush.bf16.msra.mxu0 0
    %818 = vmatpush.bf16.msra.mxu0 0
    %819 = vmatpush.bf16.msra.mxu0 %v807
    %820 = vmatpush.bf16.msra.mxu0 %v806
    %821 = vmatmul.bf16.gmra.mxu0 %v811
    %v822 = vpop.f32.mrf.mxu0
    %v823 = vadd.f32 0.0, %v822
    %v824 = vpop.f32.mrf.mxu0
    %v825 = vadd.f32 0.0, %v824
    %826 = vdwg.mxu0
    %v827 = vadd.f32 %v109, %v823
    %v828 = vadd.f32 %v110, %v825
    %v829 = vperm.slane %v440, 3
    %v830 = vadd.f32 %v827, %v829
    %v831 = vadd.f32 %v828, %v829
    %v832 = vsel %vm441, %v830, 0.0
    %833 = vadd.xlane.f32.xlu0 %v832
    %v834 = vpop.xlane.xlu0 %833
    %v835 = vsel %vm441, %v831, 0.0
    %836 = vadd.xlane.f32.xlu0 %v835
    %v837 = vpop.xlane.xlu0 %836
    %v838 = vmul.f32 %v834, %v454
    %v839 = vmul.f32 %v837, %v454
    %v840 = vsub.f32 %v830, %v838
    %v841 = vsub.f32 %v831, %v839
    %v842 = vmul.f32 %v840, %v840
    %v843 = vmul.f32 %v841, %v841
    %v844 = vsel %vm441, %v842, 0.0
    %845 = vadd.xlane.f32.xlu0 %v844
    %v846 = vpop.xlane.xlu0 %845
    %v847 = vsel %vm441, %v843, 0.0
    %848 = vadd.xlane.f32.xlu0 %v847
    %v849 = vpop.xlane.xlu0 %848
    %v850 = vmul.f32 %v846, %v454
    %v851 = vmul.f32 %v849, %v454
    %v852 = vadd.f32 %v850, 1e-05
    %v853 = vadd.f32 %v851, 1e-05
    %v854 = vrsqrt.pop %v852
    %v855 = vmul.f32 %v854, %v852
    %v856 = vmul.f32 %v855, %v854
    %v857 = vmul.f32 0.5, %v856
    %v858 = vsub.f32 1.5, %v857
    %v859 = vmul.f32 %v854, %v858
    %vm860 = vweird.f32 %v852
    %vm861 = vweird.f32 %v854
    %vm862 = vmor %vm860, %vm861
    %v863 = vsel %vm862, %v854, %v859
    %v864 = vrsqrt.pop %v853
    %v865 = vmul.f32 %v864, %v853
    %v866 = vmul.f32 %v865, %v864
    %v867 = vmul.f32 0.5, %v866
    %v868 = vsub.f32 1.5, %v867
    %v869 = vmul.f32 %v864, %v868
    %vm870 = vweird.f32 %v853
    %vm871 = vweird.f32 %v864
    %vm872 = vmor %vm870, %vm871
    %v873 = vsel %vm872, %v864, %v869
    %v874 = vmul.f32 %v840, %v863
    %v875 = vmul.f32 %v841, %v873
    %v876 = vperm.slane %v440, 4
    %v877 = vmul.f32 %v874, %v876
    %v878 = vmul.f32 %v875, %v876
    %v879 = vperm.slane %v440, 5
    %v880 = vadd.f32 %v877, %v879
    %v881 = vadd.f32 %v878, %v879
    %v882 = vld [vmem:[#allocation2 + $0x20] sm:$0xf]
    %v883 = vld [vmem:[#allocation2 + $0x24] sm:$0xf]
    %v884 = vld [vmem:[#allocation2 + $0x28] sm:$0xf]
    %v885 = vld [vmem:[#allocation2 + $0x2c] sm:$0xf]
    %v886 = vld [vmem:[#allocation2 + $0x30] sm:$0xf]
    %v887 = vld [vmem:[#allocation2 + $0x34] sm:$0xf]
    %v888 = vld [vmem:[#allocation2 + $0x38] sm:$0xf]
    %v889 = vld [vmem:[#allocation2 + $0x3c] sm:$0xf]
    %v890 = vld [vmem:[#allocation2 + $0x40] sm:$0xf]
    %v891 = vld [vmem:[#allocation2 + $0x44] sm:$0xf]
    %v892 = vld [vmem:[#allocation2 + $0x48] sm:$0xf]
    %v893 = vld [vmem:[#allocation2 + $0x4c] sm:$0xf]
    %v894 = vpack.c.bf16 %v881, %v880
    %v895 = vperm.slane %v440, 6
    %v900 = vunpack.c.l.b16 %v882
    %v901 = vunpack.c.l.b16 %v883
    %v902 = vunpack.c.l.b16 %v884
    %v903 = vunpack.c.l.b16 %v885
    %v904 = vpack.c.b16 %v901, %v900
    %v905 = vpack.c.b16 %v903, %v902
    %v909 = vsel %vm441, %v894, 0
    %911 = vmatpush.bf16.msra.mxu0 0
    %912 = vmatpush.bf16.msra.mxu0 0
    %913 = vmatpush.bf16.msra.mxu0 0
    %914 = vmatpush.bf16.msra.mxu0 0
    %915 = vmatpush.bf16.msra.mxu0 0
    %916 = vmatpush.bf16.msra.mxu0 0
    %917 = vmatpush.bf16.msra.mxu0 %v905
    %918 = vmatpush.bf16.msra.mxu0 %v904
    %919 = vmatmul.bf16.gmra.mxu0 %v909
    %v920 = vpop.f32.mrf.mxu0
    %v921 = vadd.f32 %v895, %v920
    %v922 = vpop.f32.mrf.mxu0
    %v923 = vadd.f32 %v895, %v922
    %924 = vdwg.mxu0
    %v925 = vmax.f32 %v921, 0.0
    %v926 = vmax.f32 %v923, 0.0
    %v927 = vpack.c.bf16 %v926, %v925
    %v936 = vunpack.c.l.b16 %v886
    %v937 = vunpack.c.l.b16 %v887
    %v938 = vunpack.c.l.b16 %v888
    %v939 = vunpack.c.l.b16 %v889
    %v940 = vunpack.c.l.b16 %v890
    %v941 = vunpack.c.l.b16 %v891
    %v942 = vunpack.c.l.b16 %v892
    %v943 = vunpack.c.l.b16 %v893
    %v944 = vpack.c.b16 %v937, %v936
    %v945 = vpack.c.b16 %v939, %v938
    %v946 = vpack.c.b16 %v941, %v940
    %v947 = vpack.c.b16 %v943, %v942
    %vm952 = vcmask 523264
    %v954 = vsel %vm952, %v927, 0
    %956 = vmatpush.bf16.msra.mxu0 0
    %957 = vmatpush.bf16.msra.mxu0 0
    %958 = vmatpush.bf16.msra.mxu0 0
    %959 = vmatpush.bf16.msra.mxu0 0
    %960 = vmatpush.bf16.msra.mxu0 %v947
    %961 = vmatpush.bf16.msra.mxu0 %v946
    %962 = vmatpush.bf16.msra.mxu0 %v945
    %963 = vmatpush.bf16.msra.mxu0 %v944
    %964 = vmatmul.bf16.gmra.mxu0 %v954
    %v965 = vpop.f32.mrf.mxu0
    %v966 = vadd.f32 0.0, %v965
    %v967 = vpop.f32.mrf.mxu0
    %v968 = vadd.f32 0.0, %v967
    %969 = vdwg.mxu0
    %v970 = vadd.f32 %v830, %v966
    %v971 = vadd.f32 %v831, %v968
    %v972 = vperm.slane %v440, 7
    %v973 = vadd.f32 %v970, %v972
    %v974 = vadd.f32 %v971, %v972
    %v975 = vld [vmem:[#allocation5 + $0xc8] sm:$0xff]
    %v976 = vsel %vm441, %v973, 0.0
    %977 = vadd.xlane.f32.xlu0 %v976
    %v978 = vpop.xlane.xlu0 %977
    %v979 = vsel %vm441, %v974, 0.0
    %980 = vadd.xlane.f32.xlu0 %v979
    %v981 = vpop.xlane.xlu0 %980
    %v982 = vmul.f32 %v978, %v454
    %v983 = vmul.f32 %v981, %v454
    %v984 = vsub.f32 %v973, %v982
    %v985 = vsub.f32 %v974, %v983
    %v986 = vmul.f32 %v984, %v984
    %v987 = vmul.f32 %v985, %v985
    %v988 = vsel %vm441, %v986, 0.0
    %989 = vadd.xlane.f32.xlu0 %v988
    %v990 = vpop.xlane.xlu0 %989
    %v991 = vsel %vm441, %v987, 0.0
    %992 = vadd.xlane.f32.xlu0 %v991
    %v993 = vpop.xlane.xlu0 %992
    %v994 = vmul.f32 %v990, %v454
    %v995 = vmul.f32 %v993, %v454
    %v996 = vadd.f32 %v994, 1e-05
    %v997 = vadd.f32 %v995, 1e-05
    %v998 = vrsqrt.pop %v996
    %v999 = vmul.f32 %v998, %v996
    %v1000 = vmul.f32 %v999, %v998
    %v1001 = vmul.f32 0.5, %v1000
    %v1002 = vsub.f32 1.5, %v1001
    %v1003 = vmul.f32 %v998, %v1002
    %vm1004 = vweird.f32 %v996
    %vm1005 = vweird.f32 %v998
    %vm1006 = vmor %vm1004, %vm1005
    %v1007 = vsel %vm1006, %v998, %v1003
    %v1008 = vrsqrt.pop %v997
    %v1009 = vmul.f32 %v1008, %v997
    %v1010 = vmul.f32 %v1009, %v1008
    %v1011 = vmul.f32 0.5, %v1010
    %v1012 = vsub.f32 1.5, %v1011
    %v1013 = vmul.f32 %v1008, %v1012
    %vm1014 = vweird.f32 %v997
    %vm1015 = vweird.f32 %v1008
    %vm1016 = vmor %vm1014, %vm1015
    %v1017 = vsel %vm1016, %v1008, %v1013
    %v1018 = vmul.f32 %v984, %v1007
    %v1019 = vmul.f32 %v985, %v1017
    %v1020 = vperm.slane %v975, 0
    %v1021 = vmul.f32 %v1018, %v1020
    %v1022 = vmul.f32 %v1019, %v1020
    %v1023 = vperm.slane %v975, 1
    %v1024 = vadd.f32 %v1021, %v1023
    %v1025 = vadd.f32 %v1022, %v1023
    %v1026 = vld [vmem:[#allocation2 + $0x50] sm:$0xf]
    %v1027 = vld [vmem:[#allocation2 + $0x54] sm:$0xf]
    %v1028 = vld [vmem:[#allocation2 + $0x58] sm:$0xf]
    %v1029 = vld [vmem:[#allocation2 + $0x5c] sm:$0xf]
    %v1030 = vpack.c.bf16 %v1025, %v1024
    %v1031 = vperm.slane %v975, 2
    %v1036 = vunpack.c.l.b16 %v1026
    %v1037 = vunpack.c.l.b16 %v1027
    %v1038 = vunpack.c.l.b16 %v1028
    %v1039 = vunpack.c.l.b16 %v1029
    %v1040 = vpack.c.b16 %v1037, %v1036
    %v1041 = vpack.c.b16 %v1039, %v1038
    %v1045 = vsel %vm441, %v1030, 0
    %1047 = vmatpush.bf16.msra.mxu0 0
    %1048 = vmatpush.bf16.msra.mxu0 0
    %1049 = vmatpush.bf16.msra.mxu0 0
    %1050 = vmatpush.bf16.msra.mxu0 0
    %1051 = vmatpush.bf16.msra.mxu0 0
    %1052 = vmatpush.bf16.msra.mxu0 0
    %1053 = vmatpush.bf16.msra.mxu0 %v1041
    %1054 = vmatpush.bf16.msra.mxu0 %v1040
    %1055 = vmatmul.bf16.gmra.mxu0 %v1045
    %v1056 = vpop.f32.mrf.mxu0
    %v1057 = vadd.f32 %v1031, %v1056
    %v1058 = vpop.f32.mrf.mxu0
    %v1059 = vadd.f32 %v1031, %v1058
    %1060 = vdwg.mxu0
    %v1061 = vmul.f32 %v1057, %v420
    %v1062 = vmul.f32 %v1059, %v421
    %v1063 = vmul.f32 %v1057, %v422
    %v1064 = vmul.f32 %v1059, %v423
    %v1065 = vmul.f32 %v1057, %v424
    %v1066 = vmul.f32 %v1059, %v425
    %v1067 = vmul.f32 %v1057, %v426
    %v1068 = vmul.f32 %v1059, %v427
    %1071 = vrot.lane.b32.xlu0 %v1057, 96
    %v1072 = vpop.permute.xlu0 %1071
    %1073 = vrot.lane.b32.xlu0 %v1059, 96
    %v1074 = vpop.permute.xlu0 %1073
    %v1076 = vsel %vm441, %v1061, 0
    %v1079 = vsel %vm441, %v1062, 0
    %v1082 = vsel %vm441, %v1063, 0
    %v1085 = vsel %vm441, %v1064, 0
    %v1088 = vsel %vm441, %v1065, 0
    %v1091 = vsel %vm441, %v1066, 0
    %v1094 = vsel %vm441, %v1067, 0
    %v1097 = vsel %vm441, %v1068, 0
    %v1099 = vsel %vm441, %v1072, 0
    %v1101 = vsel %vm441, %v1074, 0
    %1103 = vmatpush.xpose.msra.mxu0 0.0
    %1104 = vmatpush.xpose.msra.mxu0 0.0
    %1105 = vmatpush.xpose.msra.mxu0 0.0
    %1106 = vmatpush.xpose.msra.mxu0 0.0
    %1107 = vmatpush.xpose.msra.mxu0 0.0
    %1108 = vmatpush.xpose.msra.mxu0 0.0
    %1109 = vmatpush.xpose.msra.mxu0 0.0
    %1110 = vmatpush.xpose.msra.mxu0 0.0
    %1111 = vmatpush.xpose.msra.mxu0 0.0
    %1112 = vmatpush.xpose.msra.mxu0 0.0
    %1113 = vmatpush.xpose.msra.mxu0 0.0
    %1114 = vmatpush.xpose.msra.mxu0 0.0
    %1115 = vmatpush.xpose.msra.mxu0 0.0
    %1116 = vmatpush.xpose.msra.mxu0 0.0
    %1117 = vmatpush.xpose.msra.mxu0 %v1101
    %1118 = vmatpush.xpose.msra.mxu0 %v1099
    %1119 = vmatmul.f32.gmra.mxu0 %v1076
    %v1120 = vpop.f32.mrf.mxu0
    %v1121 = vadd.f32 %v164, %v1120
    %1122 = vmatmul.f32.gmra.mxu0 %v1079
    %v1123 = vpop.f32.mrf.mxu0
    %v1124 = vadd.f32 %v165, %v1123
    %1125 = vmatmul.f32.gmra.mxu0 %v1082
    %v1126 = vpop.f32.mrf.mxu0
    %v1127 = vadd.f32 %v164, %v1126
    %1128 = vmatmul.f32.gmra.mxu0 %v1085
    %v1129 = vpop.f32.mrf.mxu0
    %v1130 = vadd.f32 %v165, %v1129
    %1131 = vmatmul.f32.gmra.mxu0 %v1088
    %v1132 = vpop.f32.mrf.mxu0
    %v1133 = vadd.f32 %v164, %v1132
    %1134 = vmatmul.f32.gmra.mxu0 %v1091
    %v1135 = vpop.f32.mrf.mxu0
    %v1136 = vadd.f32 %v165, %v1135
    %1137 = vmatmul.f32.gmra.mxu0 %v1094
    %v1138 = vpop.f32.mrf.mxu0
    %v1139 = vadd.f32 %v164, %v1138
    %1140 = vmatmul.f32.gmra.mxu0 %v1097
    %v1141 = vpop.f32.mrf.mxu0
    %v1142 = vadd.f32 %v165, %v1141
    %1143 = vdwg.mxu0
    %v1144 = vsel %vm617, %v1121, -inf
    %1145 = vmax.xlane.f32.xlu0 %v1144
    %v1146 = vpop.xlane.xlu0 %1145
    %v1147 = vsel %vm617, %v1124, -inf
    %1148 = vmax.xlane.f32.xlu0 %v1147
    %v1149 = vpop.xlane.xlu0 %1148
    %v1150 = vsel %vm617, %v1127, -inf
    %1151 = vmax.xlane.f32.xlu0 %v1150
    %v1152 = vpop.xlane.xlu0 %1151
    %v1153 = vsel %vm617, %v1130, -inf
    %1154 = vmax.xlane.f32.xlu0 %v1153
    %v1155 = vpop.xlane.xlu0 %1154
    %v1156 = vsel %vm617, %v1133, -inf
    %1157 = vmax.xlane.f32.xlu0 %v1156
    %v1158 = vpop.xlane.xlu0 %1157
    %v1159 = vsel %vm617, %v1136, -inf
    %1160 = vmax.xlane.f32.xlu0 %v1159
    %v1161 = vpop.xlane.xlu0 %1160
    %v1162 = vsel %vm617, %v1139, -inf
    %1163 = vmax.xlane.f32.xlu0 %v1162
    %v1164 = vpop.xlane.xlu0 %1163
    %v1165 = vsel %vm617, %v1142, -inf
    %1166 = vmax.xlane.f32.xlu0 %v1165
    %v1167 = vpop.xlane.xlu0 %1166
    %v1168 = vsub.f32 %v1121, %v1146
    %v1169 = vsub.f32 %v1124, %v1149
    %v1170 = vsub.f32 %v1127, %v1152
    %v1171 = vsub.f32 %v1130, %v1155
    %v1172 = vsub.f32 %v1133, %v1158
    %v1173 = vsub.f32 %v1136, %v1161
    %v1174 = vsub.f32 %v1139, %v1164
    %v1175 = vsub.f32 %v1142, %v1167
    %v1176 = vmul.f32 %v1168, 1.442695
    %v1177 = vpow.pop %v1176
    %v1178 = vmul.f32 %v1169, 1.442695
    %v1179 = vpow.pop %v1178
    %v1180 = vmul.f32 %v1170, 1.442695
    %v1181 = vpow.pop %v1180
    %v1182 = vmul.f32 %v1171, 1.442695
    %v1183 = vpow.pop %v1182
    %v1184 = vmul.f32 %v1172, 1.442695
    %v1185 = vpow.pop %v1184
    %v1186 = vmul.f32 %v1173, 1.442695
    %v1187 = vpow.pop %v1186
    %v1188 = vmul.f32 %v1174, 1.442695
    %v1189 = vpow.pop %v1188
    %v1190 = vmul.f32 %v1175, 1.442695
    %v1191 = vpow.pop %v1190
    %v1192 = vsel %vm617, %v1177, 0.0
    %1193 = vadd.xlane.f32.xlu0 %v1192
    %v1194 = vpop.xlane.xlu0 %1193
    %v1195 = vsel %vm617, %v1179, 0.0
    %1196 = vadd.xlane.f32.xlu0 %v1195
    %v1197 = vpop.xlane.xlu0 %1196
    %v1198 = vsel %vm617, %v1181, 0.0
    %1199 = vadd.xlane.f32.xlu0 %v1198
    %v1200 = vpop.xlane.xlu0 %1199
    %v1201 = vsel %vm617, %v1183, 0.0
    %1202 = vadd.xlane.f32.xlu0 %v1201
    %v1203 = vpop.xlane.xlu0 %1202
    %v1204 = vsel %vm617, %v1185, 0.0
    %1205 = vadd.xlane.f32.xlu0 %v1204
    %v1206 = vpop.xlane.xlu0 %1205
    %v1207 = vsel %vm617, %v1187, 0.0
    %1208 = vadd.xlane.f32.xlu0 %v1207
    %v1209 = vpop.xlane.xlu0 %1208
    %v1210 = vsel %vm617, %v1189, 0.0
    %1211 = vadd.xlane.f32.xlu0 %v1210
    %v1212 = vpop.xlane.xlu0 %1211
    %v1213 = vsel %vm617, %v1191, 0.0
    %1214 = vadd.xlane.f32.xlu0 %v1213
    %v1215 = vpop.xlane.xlu0 %1214
    %v1216 = vrcp.pop %v1194
    %v1217 = vrcp.pop %v1197
    %v1218 = vrcp.pop %v1200
    %v1219 = vrcp.pop %v1203
    %v1220 = vrcp.pop %v1206
    %v1221 = vrcp.pop %v1209
    %v1222 = vrcp.pop %v1212
    %v1223 = vrcp.pop %v1215
    %v1224 = vmul.f32 %v1177, %v1216
    %v1225 = vmul.f32 %v1179, %v1217
    %v1226 = vmul.f32 %v1181, %v1218
    %v1227 = vmul.f32 %v1183, %v1219
    %v1228 = vmul.f32 %v1185, %v1220
    %v1229 = vmul.f32 %v1187, %v1221
    %v1230 = vmul.f32 %v1189, %v1222
    %v1231 = vmul.f32 %v1191, %v1223
    %1232 = vrot.lane.b32.xlu0 %v1057, 64
    %v1233 = vpop.permute.xlu0 %1232
    %1234 = vrot.lane.b32.xlu0 %v1059, 64
    %v1235 = vpop.permute.xlu0 %1234
    %v1239 = vsel %vm617, %v1224, 0
    %v1242 = vsel %vm617, %v1225, 0
    %v1245 = vsel %vm617, %v1226, 0
    %v1248 = vsel %vm617, %v1227, 0
    %v1251 = vsel %vm617, %v1228, 0
    %v1254 = vsel %vm617, %v1229, 0
    %v1257 = vsel %vm617, %v1230, 0
    %v1260 = vsel %vm617, %v1231, 0
    %1262 = vmatpush.msra.mxu0 0.0
    %1263 = vmatpush.msra.mxu0 0.0
    %1264 = vmatpush.msra.mxu0 0.0
    %1265 = vmatpush.msra.mxu0 0.0
    %1266 = vmatpush.msra.mxu0 0.0
    %1267 = vmatpush.msra.mxu0 0.0
    %1268 = vmatpush.msra.mxu0 0.0
    %1269 = vmatpush.msra.mxu0 0.0
    %1270 = vmatpush.msra.mxu0 0.0
    %1271 = vmatpush.msra.mxu0 0.0
    %1272 = vmatpush.msra.mxu0 0.0
    %1273 = vmatpush.msra.mxu0 0.0
    %1274 = vmatpush.msra.mxu0 0.0
    %1275 = vmatpush.msra.mxu0 0.0
    %1276 = vmatpush.msra.mxu0 %v1235
    %1277 = vmatpush.msra.mxu0 %v1233
    %1278 = vmatmul.f32.gmra.mxu0 %v1239
    %v1279 = vpop.f32.mrf.mxu0
    %v1280 = vadd.f32 0.0, %v1279
    %1281 = vmatmul.f32.gmra.mxu0 %v1242
    %v1282 = vpop.f32.mrf.mxu0
    %v1283 = vadd.f32 0.0, %v1282
    %1284 = vmatmul.f32.gmra.mxu0 %v1245
    %v1285 = vpop.f32.mrf.mxu0
    %v1286 = vadd.f32 0.0, %v1285
    %1287 = vmatmul.f32.gmra.mxu0 %v1248
    %v1288 = vpop.f32.mrf.mxu0
    %v1289 = vadd.f32 0.0, %v1288
    %1290 = vmatmul.f32.gmra.mxu0 %v1251
    %v1291 = vpop.f32.mrf.mxu0
    %v1292 = vadd.f32 0.0, %v1291
    %1293 = vmatmul.f32.gmra.mxu0 %v1254
    %v1294 = vpop.f32.mrf.mxu0
    %v1295 = vadd.f32 0.0, %v1294
    %1296 = vmatmul.f32.gmra.mxu0 %v1257
    %v1297 = vpop.f32.mrf.mxu0
    %v1298 = vadd.f32 0.0, %v1297
    %1299 = vmatmul.f32.gmra.mxu0 %v1260
    %v1300 = vpop.f32.mrf.mxu0
    %v1301 = vadd.f32 0.0, %v1300
    %1302 = vdwg.mxu0
    %v1303 = vmul.f32 %v1280, %v430
    %v1304 = vmul.f32 %v1283, %v430
    %v1305 = vadd.f32 %v1303, 0.0
    %v1306 = vadd.f32 %v1304, 0.0
    %v1307 = vmul.f32 %v1286, %v433
    %v1308 = vmul.f32 %v1289, %v433
    %v1309 = vadd.f32 %v1305, %v1307
    %v1310 = vadd.f32 %v1306, %v1308
    %v1311 = vmul.f32 %v1292, %v436
    %v1312 = vmul.f32 %v1295, %v436
    %v1313 = vadd.f32 %v1309, %v1311
    %v1314 = vadd.f32 %v1310, %v1312
    %v1315 = vmul.f32 %v1298, %v439
    %v1316 = vmul.f32 %v1301, %v439
    %v1317 = vadd.f32 %v1313, %v1315
    %v1318 = vadd.f32 %v1314, %v1316
    %v1319 = vld [vmem:[#allocation2 + $0x60] sm:$0xf]
    %v1320 = vld [vmem:[#allocation2 + $0x64] sm:$0xf]
    %v1321 = vld [vmem:[#allocation2 + $0x68] sm:$0xf]
    %v1322 = vld [vmem:[#allocation2 + $0x6c] sm:$0xf]
    %v1323 = vpack.c.bf16 %v1318, %v1317
    %v1328 = vunpack.c.l.b16 %v1319
    %v1329 = vunpack.c.l.b16 %v1320
    %v1330 = vunpack.c.l.b16 %v1321
    %v1331 = vunpack.c.l.b16 %v1322
    %v1332 = vpack.c.b16 %v1329, %v1328
    %v1333 = vpack.c.b16 %v1331, %v1330
    %v1337 = vsel %vm441, %v1323, 0
    %1339 = vmatpush.bf16.msra.mxu0 0
    %1340 = vmatpush.bf16.msra.mxu0 0
    %1341 = vmatpush.bf16.msra.mxu0 0
    %1342 = vmatpush.bf16.msra.mxu0 0
    %1343 = vmatpush.bf16.msra.mxu0 0
    %1344 = vmatpush.bf16.msra.mxu0 0
    %1345 = vmatpush.bf16.msra.mxu0 %v1333
    %1346 = vmatpush.bf16.msra.mxu0 %v1332
    %1347 = vmatmul.bf16.gmra.mxu0 %v1337
    %v1348 = vpop.f32.mrf.mxu0
    %v1349 = vadd.f32 0.0, %v1348
    %v1350 = vpop.f32.mrf.mxu0
    %v1351 = vadd.f32 0.0, %v1350
    %1352 = vdwg.mxu0
    %v1353 = vadd.f32 %v973, %v1349
    %v1354 = vadd.f32 %v974, %v1351
    %v1355 = vperm.slane %v975, 3
    %v1356 = vadd.f32 %v1353, %v1355
    %v1357 = vadd.f32 %v1354, %v1355
    %v1358 = vsel %vm441, %v1356, 0.0
    %1359 = vadd.xlane.f32.xlu0 %v1358
    %v1360 = vpop.xlane.xlu0 %1359
    %v1361 = vsel %vm441, %v1357, 0.0
    %1362 = vadd.xlane.f32.xlu0 %v1361
    %v1363 = vpop.xlane.xlu0 %1362
    %v1364 = vmul.f32 %v1360, %v454
    %v1365 = vmul.f32 %v1363, %v454
    %v1366 = vsub.f32 %v1356, %v1364
    %v1367 = vsub.f32 %v1357, %v1365
    %v1368 = vmul.f32 %v1366, %v1366
    %v1369 = vmul.f32 %v1367, %v1367
    %v1370 = vsel %vm441, %v1368, 0.0
    %1371 = vadd.xlane.f32.xlu0 %v1370
    %v1372 = vpop.xlane.xlu0 %1371
    %v1373 = vsel %vm441, %v1369, 0.0
    %1374 = vadd.xlane.f32.xlu0 %v1373
    %v1375 = vpop.xlane.xlu0 %1374
    %v1376 = vmul.f32 %v1372, %v454
    %v1377 = vmul.f32 %v1375, %v454
    %v1378 = vadd.f32 %v1376, 1e-05
    %v1379 = vadd.f32 %v1377, 1e-05
    %v1380 = vrsqrt.pop %v1378
    %v1381 = vmul.f32 %v1380, %v1378
    %v1382 = vmul.f32 %v1381, %v1380
    %v1383 = vmul.f32 0.5, %v1382
    %v1384 = vsub.f32 1.5, %v1383
    %v1385 = vmul.f32 %v1380, %v1384
    %vm1386 = vweird.f32 %v1378
    %vm1387 = vweird.f32 %v1380
    %vm1388 = vmor %vm1386, %vm1387
    %v1389 = vsel %vm1388, %v1380, %v1385
    %v1390 = vrsqrt.pop %v1379
    %v1391 = vmul.f32 %v1390, %v1379
    %v1392 = vmul.f32 %v1391, %v1390
    %v1393 = vmul.f32 0.5, %v1392
    %v1394 = vsub.f32 1.5, %v1393
    %v1395 = vmul.f32 %v1390, %v1394
    %vm1396 = vweird.f32 %v1379
    %vm1397 = vweird.f32 %v1390
    %vm1398 = vmor %vm1396, %vm1397
    %v1399 = vsel %vm1398, %v1390, %v1395
    %v1400 = vmul.f32 %v1366, %v1389
    %v1401 = vmul.f32 %v1367, %v1399
    %v1402 = vperm.slane %v975, 4
    %v1403 = vmul.f32 %v1400, %v1402
    %v1404 = vmul.f32 %v1401, %v1402
    %v1405 = vperm.slane %v975, 5
    %v1406 = vadd.f32 %v1403, %v1405
    %v1407 = vadd.f32 %v1404, %v1405
    %v1408 = vld [vmem:[#allocation2 + $0x70] sm:$0xf]
    %v1409 = vld [vmem:[#allocation2 + $0x74] sm:$0xf]
    %v1410 = vld [vmem:[#allocation2 + $0x78] sm:$0xf]
    %v1411 = vld [vmem:[#allocation2 + $0x7c] sm:$0xf]
    %v1412 = vld [vmem:[#allocation2 + $0x80] sm:$0xf]
    %v1413 = vld [vmem:[#allocation2 + $0x84] sm:$0xf]
    %v1414 = vld [vmem:[#allocation2 + $0x88] sm:$0xf]
    %v1415 = vld [vmem:[#allocation2 + $0x8c] sm:$0xf]
    %v1416 = vld [vmem:[#allocation2 + $0x90] sm:$0xf]
    %v1417 = vld [vmem:[#allocation2 + $0x94] sm:$0xf]
    %v1418 = vld [vmem:[#allocation2 + $0x98] sm:$0xf]
    %v1419 = vld [vmem:[#allocation2 + $0x9c] sm:$0xf]
    %v1420 = vpack.c.bf16 %v1407, %v1406
    %v1421 = vperm.slane %v975, 6
    %v1426 = vunpack.c.l.b16 %v1408
    %v1427 = vunpack.c.l.b16 %v1409
    %v1428 = vunpack.c.l.b16 %v1410
    %v1429 = vunpack.c.l.b16 %v1411
    %v1430 = vpack.c.b16 %v1427, %v1426
    %v1431 = vpack.c.b16 %v1429, %v1428
    %v1435 = vsel %vm441, %v1420, 0
    %1437 = vmatpush.bf16.msra.mxu0 0
    %1438 = vmatpush.bf16.msra.mxu0 0
    %1439 = vmatpush.bf16.msra.mxu0 0
    %1440 = vmatpush.bf16.msra.mxu0 0
    %1441 = vmatpush.bf16.msra.mxu0 0
    %1442 = vmatpush.bf16.msra.mxu0 0
    %1443 = vmatpush.bf16.msra.mxu0 %v1431
    %1444 = vmatpush.bf16.msra.mxu0 %v1430
    %1445 = vmatmul.bf16.gmra.mxu0 %v1435
    %v1446 = vpop.f32.mrf.mxu0
    %v1447 = vadd.f32 %v1421, %v1446
    %v1448 = vpop.f32.mrf.mxu0
    %v1449 = vadd.f32 %v1421, %v1448
    %1450 = vdwg.mxu0
    %v1451 = vmax.f32 %v1447, 0.0
    %v1452 = vmax.f32 %v1449, 0.0
    %v1453 = vpack.c.bf16 %v1452, %v1451
    %v1462 = vunpack.c.l.b16 %v1412
    %v1463 = vunpack.c.l.b16 %v1413
    %v1464 = vunpack.c.l.b16 %v1414
    %v1465 = vunpack.c.l.b16 %v1415
    %v1466 = vunpack.c.l.b16 %v1416
    %v1467 = vunpack.c.l.b16 %v1417
    %v1468 = vunpack.c.l.b16 %v1418
    %v1469 = vunpack.c.l.b16 %v1419
    %v1470 = vpack.c.b16 %v1463, %v1462
    %v1471 = vpack.c.b16 %v1465, %v1464
    %v1472 = vpack.c.b16 %v1467, %v1466
    %v1473 = vpack.c.b16 %v1469, %v1468
    %v1479 = vsel %vm952, %v1453, 0
    %1481 = vmatpush.bf16.msra.mxu0 0
    %1482 = vmatpush.bf16.msra.mxu0 0
    %1483 = vmatpush.bf16.msra.mxu0 0
    %1484 = vmatpush.bf16.msra.mxu0 0
    %1485 = vmatpush.bf16.msra.mxu0 %v1473
    %1486 = vmatpush.bf16.msra.mxu0 %v1472
    %1487 = vmatpush.bf16.msra.mxu0 %v1471
    %1488 = vmatpush.bf16.msra.mxu0 %v1470
    %1489 = vmatmul.bf16.gmra.mxu0 %v1479
    %v1490 = vpop.f32.mrf.mxu0
    %v1491 = vadd.f32 0.0, %v1490
    %v1492 = vpop.f32.mrf.mxu0
    %v1493 = vadd.f32 0.0, %v1492
    %1494 = vdwg.mxu0
    %v1495 = vadd.f32 %v1356, %v1491
    %v1496 = vadd.f32 %v1357, %v1493
    %v1497 = vperm.slane %v975, 7
    %v1498 = vadd.f32 %v1495, %v1497
    %v1499 = vadd.f32 %v1496, %v1497
    %v1500 = vld [vmem:[#allocation5 + $0xd0] sm:$0xff]
    %v1501 = vsel %vm441, %v1498, 0.0
    %1502 = vadd.xlane.f32.xlu0 %v1501
    %v1503 = vpop.xlane.xlu0 %1502
    %v1504 = vsel %vm441, %v1499, 0.0
    %1505 = vadd.xlane.f32.xlu0 %v1504
    %v1506 = vpop.xlane.xlu0 %1505
    %v1507 = vmul.f32 %v1503, %v454
    %v1508 = vmul.f32 %v1506, %v454
    %v1509 = vsub.f32 %v1498, %v1507
    %v1510 = vsub.f32 %v1499, %v1508
    %v1511 = vmul.f32 %v1509, %v1509
    %v1512 = vmul.f32 %v1510, %v1510
    %v1513 = vsel %vm441, %v1511, 0.0
    %1514 = vadd.xlane.f32.xlu0 %v1513
    %v1515 = vpop.xlane.xlu0 %1514
    %v1516 = vsel %vm441, %v1512, 0.0
    %1517 = vadd.xlane.f32.xlu0 %v1516
    %v1518 = vpop.xlane.xlu0 %1517
    %v1519 = vmul.f32 %v1515, %v454
    %v1520 = vmul.f32 %v1518, %v454
    %v1521 = vadd.f32 %v1519, 1e-05
    %v1522 = vadd.f32 %v1520, 1e-05
    %v1523 = vrsqrt.pop %v1521
    %v1524 = vmul.f32 %v1523, %v1521
    %v1525 = vmul.f32 %v1524, %v1523
    %v1526 = vmul.f32 0.5, %v1525
    %v1527 = vsub.f32 1.5, %v1526
    %v1528 = vmul.f32 %v1523, %v1527
    %vm1529 = vweird.f32 %v1521
    %vm1530 = vweird.f32 %v1523
    %vm1531 = vmor %vm1529, %vm1530
    %v1532 = vsel %vm1531, %v1523, %v1528
    %v1533 = vrsqrt.pop %v1522
    %v1534 = vmul.f32 %v1533, %v1522
    %v1535 = vmul.f32 %v1534, %v1533
    %v1536 = vmul.f32 0.5, %v1535
    %v1537 = vsub.f32 1.5, %v1536
    %v1538 = vmul.f32 %v1533, %v1537
    %vm1539 = vweird.f32 %v1522
    %vm1540 = vweird.f32 %v1533
    %vm1541 = vmor %vm1539, %vm1540
    %v1542 = vsel %vm1541, %v1533, %v1538
    %v1543 = vmul.f32 %v1509, %v1532
    %v1544 = vmul.f32 %v1510, %v1542
    %v1545 = vperm.slane %v1500, 0
    %v1546 = vmul.f32 %v1543, %v1545
    %v1547 = vmul.f32 %v1544, %v1545
    %v1548 = vperm.slane %v1500, 1
    %v1549 = vadd.f32 %v1546, %v1548
    %v1550 = vadd.f32 %v1547, %v1548
    %v1551 = vld [vmem:[#allocation2 + $0xa0] sm:$0xf]
    %v1552 = vld [vmem:[#allocation2 + $0xa4] sm:$0xf]
    %v1553 = vld [vmem:[#allocation2 + $0xa8] sm:$0xf]
    %v1554 = vld [vmem:[#allocation2 + $0xac] sm:$0xf]
    %v1555 = vpack.c.bf16 %v1550, %v1549
    %v1556 = vperm.slane %v1500, 2
    %v1561 = vunpack.c.l.b16 %v1551
    %v1562 = vunpack.c.l.b16 %v1552
    %v1563 = vunpack.c.l.b16 %v1553
    %v1564 = vunpack.c.l.b16 %v1554
    %v1565 = vpack.c.b16 %v1562, %v1561
    %v1566 = vpack.c.b16 %v1564, %v1563
    %v1570 = vsel %vm441, %v1555, 0
    %1572 = vmatpush.bf16.msra.mxu0 0
    %1573 = vmatpush.bf16.msra.mxu0 0
    %1574 = vmatpush.bf16.msra.mxu0 0
    %1575 = vmatpush.bf16.msra.mxu0 0
    %1576 = vmatpush.bf16.msra.mxu0 0
    %1577 = vmatpush.bf16.msra.mxu0 0
    %1578 = vmatpush.bf16.msra.mxu0 %v1566
    %1579 = vmatpush.bf16.msra.mxu0 %v1565
    %1580 = vmatmul.bf16.gmra.mxu0 %v1570
    %v1581 = vpop.f32.mrf.mxu0
    %v1582 = vadd.f32 %v1556, %v1581
    %v1583 = vpop.f32.mrf.mxu0
    %v1584 = vadd.f32 %v1556, %v1583
    %1585 = vdwg.mxu0
    %1586 = vst [vmem:[#allocation7] sm:$0xff] %v1582
    %1587 = vst [vmem:[#allocation7 + $0x8] sm:$0xff] %v1584
    // Predicated region
    $region26: #{text_generator_forward.1} parent=1 // pred_check
      _
    $region27: #{text_generator_forward.1} parent=1 // pred_check_branch
      %1589 = sbr.rel (0) target = $region29
    $region28: #{text_generator_forward.1} parent=1 // pred_region
      %1591 = vsyncadd [#allocation4], 0
      %s1592 = sshll.u32 [#allocation7], 4
      %s1593 = int_to_ptr.vmem [resolvable:$true] %s1592
      %s1594 = sshll.u32 %s4, 4
      %s1595 = int_to_ptr.hbm [resolvable:$true] %s1594
      %1600 = dma.vmem_to_hbm [thread:$0]  %s1593, 256, %s1595, [#allocation4], 128, 128, 8
    $region29: #{text_generator_forward.1} parent=1 // pred_fallthru
      _
    // Predicated region
    $region30: #{text_generator_forward.1} parent=1 // pred_check
      _
    $region31: #{text_generator_forward.1} parent=1 // pred_check_branch
      %1602 = sbr.rel (0) target = $region33
    $region32: #{text_generator_forward.1} parent=1 // pred_region
      %1604 = dma.done [#allocation4], 256
    $region33: #{text_generator_forward.1} parent=1 // pred_fallthru
      _
    %1605 = vsyncpa [#allocation3], 1
    %1606 = vsyncpa [#allocation6], 1
    %1607 = vsyncpa [#allocation4], 1

</llo_original>
